<compile_context>
chip_gen: v7x
topology: tpu7x:2x2x1
jax: 0.10.0
libtpu: 0.0.40
codegen_flags: <defaults>
</compile_context>

<pallas_src>
import math
import jax
import jax.numpy as jnp
from jax import lax
from jax.experimental import pallas as pl
from jax.experimental.pallas import tpu as pltpu

# ------------------------- model hyper-parameters --------------------------
HIDDEN = 32                    # mca_HIDDEN_SIZE
N_HEAD = 4                     # mca_MULTI_HEAD
D_HEAD = HIDDEN // N_HEAD      # mca_HIDDEN_SIZE_HEAD
FF = 64                        # mca_FF_SIZE
EPS = 1e-6
# mca_DROPOUT_R: dropout is identity at inference time -> not applied.


def _layernorm(x, gamma, beta):
    # torch-style custom LayerNorm: a * (x - mean) / (std_unbiased + eps) + b
    mean = jnp.mean(x, axis=-1, keepdims=True)
    d = x - mean
    var = jnp.sum(d * d, axis=-1, keepdims=True) * (1.0 / (x.shape[-1] - 1))
    # exact reciprocal here (review: LN approx error was the dominant
    # numerical-error contributor; cost is negligible at this size).
    inv = pl.reciprocal(jnp.sqrt(var) + EPS)
    return gamma * (d * inv) + beta


def _pack_params(params):
    """Collapse 16 parameter tensors into 3 packed arrays."""
    (wq, bq, wk, bk, wv, bv, wm, bm, w1, b1, w2, b2, g1, be1, g2, be2) = params
    scale = 1.0 / math.sqrt(D_HEAD)
    # fused input-side weight slab: [ wq*s | wk | wv | wm | w1 ] -> (H, 4H+FF)
    w_in = jnp.concatenate([wq * scale, wk, wv, wm, w1],
                           axis=1).astype(jnp.float32)
    # bias / layernorm-parameter slab: one (8, 128) f32 tile
    vec = jnp.zeros((8, 4 * HIDDEN), jnp.float32)
    bqkv = jnp.concatenate(
        [bq.reshape(-1) * scale, bk.reshape(-1), bv.reshape(-1)])
    vec = vec.at[0, :3 * HIDDEN].set(bqkv)
    vec = vec.at[1, :FF].set(b1.reshape(-1))
    vec = vec.at[2, :HIDDEN].set(bm.reshape(-1))
    vec = vec.at[2, HIDDEN:2 * HIDDEN].set(b2.reshape(-1))
    vec = vec.at[3, :HIDDEN].set(g1.reshape(-1))
    vec = vec.at[3, HIDDEN:2 * HIDDEN].set(be1.reshape(-1))
    vec = vec.at[3, 2 * HIDDEN:3 * HIDDEN].set(g2.reshape(-1))
    vec = vec.at[3, 3 * HIDDEN:4 * HIDDEN].set(be2.reshape(-1))
    return w_in, w2.astype(jnp.float32), vec


def sa_forward(x, params):
    B, S, H = x.shape
    assert H == HIDDEN
    rows = B * S                               # all batch rows in one slab

    w_in, w2, vec = _pack_params(params)
    x2d = x.reshape(rows, H)

    def kernel(x_ref, w_in_ref, w2_ref, vec_ref, o_ref):
        w_all = w_in_ref[...]
        vecs = vec_ref[...]
        wqkv = w_all[:, :3 * H]
        wm = w_all[:, 3 * H:4 * H]
        w1 = w_all[:, 4 * H:4 * H + FF]
        bqkv = vecs[0:1, :3 * H]
        b1 = vecs[1:2, :FF]
        bm = vecs[2:3, :H]
        b2 = vecs[2:3, H:2 * H]
        g1 = vecs[3:4, :H]
        be1 = vecs[3:4, H:2 * H]
        g2 = vecs[3:4, 2 * H:3 * H]
        be2 = vecs[3:4, 3 * H:4 * H]

        xin = x_ref[...].astype(jnp.float32)                 # (rows, H)

        # ---- fused q|k|v projection (1/sqrt(d) already folded into wq, bq) -
        qkv = jnp.dot(xin, wqkv,
                      preferred_element_type=jnp.float32) + bqkv  # (rows, 3H)

        # ---- multi-head attention --------------------------------------
        # 1) per-(batch, head) score tiles: q @ k^T via direct contraction
        #    (no transpose relayout), gathered along the sublane axis.
        score_list = []
        for b in range(B):
            r = b * S
            for h in range(N_HEAD):
                c = h * D_HEAD
                qh = qkv[r:r + S, c:c + D_HEAD]
                kh = qkv[r:r + S, H + c:H + c + D_HEAD]
                score_list.append(
                    lax.dot_general(qh, kh, (((1,), (1,)), ((), ())),
                                    preferred_element_type=jnp.float32))
        scores = jnp.concatenate(score_list, axis=0)     # (B*N_HEAD*S, S)

        # 2) ONE batched softmax over all (batch, head) pairs (sublane-stacked)
        scores = scores - jnp.max(scores, axis=-1, keepdims=True)
        p_all = jnp.exp(scores)
        p_all = p_all * pl.reciprocal(
            jnp.sum(p_all, axis=-1, keepdims=True), approx=True)

        # 3) per-head p @ v, re-assembled into a (rows, H) slab
        per_batch = []
        idx = 0
        for b in range(B):
            r = b * S
            heads = []
            for h in range(N_HEAD):
                c = h * D_HEAD
                vh = qkv[r:r + S, 2 * H + c:2 * H + c + D_HEAD]
                ph = p_all[idx * S:(idx + 1) * S, :]      # tile-aligned slice
                heads.append(jnp.dot(ph, vh,
                                     preferred_element_type=jnp.float32))
                idx += 1
            per_batch.append(jnp.concatenate(heads, axis=-1))    # (S, H)
        atted = (per_batch[0] if B == 1
                 else jnp.concatenate(per_batch, axis=0))        # (rows, H)

        # ---- merge projection, residual + LayerNorm 1 ----------------------
        atted = jnp.dot(atted, wm, preferred_element_type=jnp.float32) + bm
        x1 = _layernorm(xin + atted, g1, be1)

        # ---- FFN (Linear -> ReLU -> Linear), residual + LayerNorm 2 --------
        hmid = jnp.maximum(
            jnp.dot(x1, w1, preferred_element_type=jnp.float32) + b1, 0.0)
        ffo = jnp.dot(hmid, w2_ref[...],
                      preferred_element_type=jnp.float32) + b2
        x2 = _layernorm(x1 + ffo, g2, be2)

        # ---- direct (rows, H) store; wrapper reshapes (no in-kernel relayout)
        o_ref[...] = x2.astype(o_ref.dtype)

    out = pl.pallas_call(
        kernel,
        out_shape=jax.ShapeDtypeStruct((rows, H), x.dtype),
        grid=(1,),
        in_specs=[
            pl.BlockSpec((rows, H), lambda i: (0, 0)),
            pl.BlockSpec(w_in.shape, lambda i: (0, 0)),
            pl.BlockSpec(w2.shape, lambda i: (0, 0)),
            pl.BlockSpec(vec.shape, lambda i: (0, 0)),
        ],
        out_specs=pl.BlockSpec((rows, H), lambda i: (0, 0)),
        compiler_params=pltpu.CompilerParams(
            dimension_semantics=("arbitrary",)),
    )(x2d, w_in, w2, vec)
    return out.reshape(B, S, H)


# ----------------------------- reference (pure JAX) ------------------------
def sa_reference(x, params):
    (wq, bq, wk, bk, wv, bv, wm, bm, w1, b1, w2, b2, g1, be1, g2, be2) = params
    B, S, H = x.shape
    q = x @ wq + bq
    k = x @ wk + bk
    v = x @ wv + bv
    qh = q.reshape(B, S, N_HEAD, D_HEAD).transpose(0, 2, 1, 3)
    kh = k.reshape(B, S, N_HEAD, D_HEAD).transpose(0, 2, 1, 3)
    vh = v.reshape(B, S, N_HEAD, D_HEAD).transpose(0, 2, 1, 3)
    s = jnp.einsum('bhqd,bhkd->bhqk', qh, kh) / math.sqrt(D_HEAD)
    p = jax.nn.softmax(s, axis=-1)
    a = jnp.einsum('bhqk,bhkd->bhqd', p, vh)
    a = a.transpose(0, 2, 1, 3).reshape(B, S, H)
    a = a @ wm + bm

    def ln(z, g, b):
        mean = jnp.mean(z, -1, keepdims=True)
        d = z - mean
        var = jnp.sum(d * d, -1, keepdims=True) / (z.shape[-1] - 1)
        return g * d / (jnp.sqrt(var) + EPS) + b

    x1 = ln(x + a, g1, be1)
    h = jnp.maximum(x1 @ w1 + b1, 0.0)
    f = h @ w2 + b2
    return ln(x1 + f, g2, be2)


# -------------------------------- main --------------------------------------
if __name__ == "__main__":
    key = jax.random.PRNGKey(0)
    keys = jax.random.split(key, 16)

    B, S = 2, 8
    x = jax.random.normal(keys[0], (B, S, HIDDEN), dtype=jnp.float32)

    def lin(k, din, dout):
        # torch nn.Linear weight is [out, in]; we store it transposed [in, out]
        w = jax.random.normal(k, (dout, din), dtype=jnp.float32) * 0.05
        return w.T

    wq = lin(keys[1], HIDDEN, HIDDEN); bq = jnp.zeros((1, HIDDEN), jnp.float32)
    wk = lin(keys[2], HIDDEN, HIDDEN); bk = jnp.full((1, HIDDEN), 0.01, jnp.float32)
    wv = lin(keys[3], HIDDEN, HIDDEN); bv = jnp.full((1, HIDDEN), -0.01, jnp.float32)
    wm = lin(keys[4], HIDDEN, HIDDEN); bm = jnp.zeros((1, HIDDEN), jnp.float32)
    w1 = lin(keys[5], HIDDEN, FF);     b1 = jnp.full((1, FF), 0.02, jnp.float32)
    w2 = lin(keys[6], FF, HIDDEN);     b2 = jnp.zeros((1, HIDDEN), jnp.float32)
    g1 = jnp.ones((1, HIDDEN), jnp.float32);  be1 = jnp.zeros((1, HIDDEN), jnp.float32)
    g2 = jnp.ones((1, HIDDEN), jnp.float32);  be2 = jnp.zeros((1, HIDDEN), jnp.float32)

    params = (wq, bq, wk, bk, wv, bv, wm, bm, w1, b1, w2, b2, g1, be1, g2, be2)

    out = sa_forward(x, params)
    out = jax.block_until_ready(out)

    ref = sa_reference(x, params)
    # LayerNorm reciprocals are now exact; only the softmax denominator uses
    # the EUP approximate reciprocal, so the tolerance can be tightened vs.
    # the previous 3e-3.
    if not jnp.allclose(out, ref, atol=2e-3, rtol=2e-3):
        raise AssertionError("Pallas output does not match reference")

    print("KERNEL_OK")
</pallas_src>

<mosaic_0001>
module attributes {stable_mosaic.version = 11 : i64} {
  func.func @kernel(%arg0: i32, %arg1: memref<16x32xf32, #tpu.memory_space<vmem>>, %arg2: memref<32x192xf32, #tpu.memory_space<vmem>>, %arg3: memref<64x32xf32, #tpu.memory_space<vmem>>, %arg4: memref<8x128xf32, #tpu.memory_space<vmem>>, %arg5: memref<16x32xf32, #tpu.memory_space<vmem>>) attributes {dimension_semantics = [#tpu.dimension_semantics<arbitrary>], iteration_bounds = array<i64: 1>, scalar_prefetch = 0 : i64, scratch_operands = 0 : i64, tpu.core_type = #tpu.core_type<tc>, window_params = [{pipeline_mode = #tpu.pipeline_mode<synchronous>, transform_indices = @transform_0, window_bounds = array<i64: 16, 32>}, {pipeline_mode = #tpu.pipeline_mode<synchronous>, transform_indices = @transform_1, window_bounds = array<i64: 32, 192>}, {pipeline_mode = #tpu.pipeline_mode<synchronous>, transform_indices = @transform_2, window_bounds = array<i64: 64, 32>}, {pipeline_mode = #tpu.pipeline_mode<synchronous>, transform_indices = @transform_3, window_bounds = array<i64: 8, 128>}, {pipeline_mode = #tpu.pipeline_mode<synchronous>, transform_indices = @transform_4, window_bounds = array<i64: 16, 32>}]} {
    %c0 = arith.constant 0 : index
    %c0_0 = arith.constant 0 : index
    %0 = vector.load %arg2[%c0, %c0_0] : memref<32x192xf32, #tpu.memory_space<vmem>>, vector<32x192xf32>
    %c0_1 = arith.constant 0 : index
    %c0_2 = arith.constant 0 : index
    %1 = vector.load %arg4[%c0_1, %c0_2] : memref<8x128xf32, #tpu.memory_space<vmem>>, vector<8x128xf32>
    %2 = vector.extract_strided_slice %0 {offsets = [0, 0], sizes = [32, 96], strides = [1, 1]} : vector<32x192xf32> to vector<32x96xf32>
    %3 = vector.extract_strided_slice %0 {offsets = [0, 96], sizes = [32, 32], strides = [1, 1]} : vector<32x192xf32> to vector<32x32xf32>
    %4 = vector.extract_strided_slice %0 {offsets = [0, 128], sizes = [32, 64], strides = [1, 1]} : vector<32x192xf32> to vector<32x64xf32>
    %5 = vector.extract_strided_slice %1 {offsets = [0, 0], sizes = [1, 96], strides = [1, 1]} : vector<8x128xf32> to vector<1x96xf32>
    %6 = vector.extract_strided_slice %1 {offsets = [1, 0], sizes = [1, 64], strides = [1, 1]} : vector<8x128xf32> to vector<1x64xf32>
    %7 = vector.extract_strided_slice %1 {offsets = [2, 0], sizes = [1, 32], strides = [1, 1]} : vector<8x128xf32> to vector<1x32xf32>
    %8 = vector.extract_strided_slice %1 {offsets = [2, 32], sizes = [1, 32], strides = [1, 1]} : vector<8x128xf32> to vector<1x32xf32>
    %9 = vector.extract_strided_slice %1 {offsets = [3, 0], sizes = [1, 32], strides = [1, 1]} : vector<8x128xf32> to vector<1x32xf32>
    %10 = vector.extract_strided_slice %1 {offsets = [3, 32], sizes = [1, 32], strides = [1, 1]} : vector<8x128xf32> to vector<1x32xf32>
    %11 = vector.extract_strided_slice %1 {offsets = [3, 64], sizes = [1, 32], strides = [1, 1]} : vector<8x128xf32> to vector<1x32xf32>
    %12 = vector.extract_strided_slice %1 {offsets = [3, 96], sizes = [1, 32], strides = [1, 1]} : vector<8x128xf32> to vector<1x32xf32>
    %c0_3 = arith.constant 0 : index
    %c0_4 = arith.constant 0 : index
    %13 = vector.load %arg1[%c0_3, %c0_4] : memref<16x32xf32, #tpu.memory_space<vmem>>, vector<16x32xf32>
    %cst = arith.constant dense<0.000000e+00> : vector<16x96xf32>
    %14 = tpu.matmul %13, %2, %cst {dimension_numbers = #tpu.dot_dimension_numbers<[1], [0], [0], [1], [0, 0, 1, 1], [], []>} : vector<16x32xf32>, vector<32x96xf32>, vector<16x96xf32> -> vector<16x96xf32>
    %15 = vector.broadcast %5 : vector<1x96xf32> to vector<16x96xf32>
    %16 = arith.addf %14, %15 : vector<16x96xf32>
    %17 = vector.extract_strided_slice %16 {offsets = [0, 0], sizes = [8, 8], strides = [1, 1]} : vector<16x96xf32> to vector<8x8xf32>
    %18 = vector.extract_strided_slice %16 {offsets = [0, 32], sizes = [8, 8], strides = [1, 1]} : vector<16x96xf32> to vector<8x8xf32>
    %cst_5 = arith.constant dense<0.000000e+00> : vector<8x8xf32>
    %19 = tpu.matmul %17, %18, %cst_5 {dimension_numbers = #tpu.dot_dimension_numbers<[1], [1], [0], [0], [0, 0, 1, 0], [], []>} : vector<8x8xf32>, vector<8x8xf32>, vector<8x8xf32> -> vector<8x8xf32>
    %20 = vector.extract_strided_slice %16 {offsets = [0, 8], sizes = [8, 8], strides = [1, 1]} : vector<16x96xf32> to vector<8x8xf32>
    %21 = vector.extract_strided_slice %16 {offsets = [0, 40], sizes = [8, 8], strides = [1, 1]} : vector<16x96xf32> to vector<8x8xf32>
    %cst_6 = arith.constant dense<0.000000e+00> : vector<8x8xf32>
    %22 = tpu.matmul %20, %21, %cst_6 {dimension_numbers = #tpu.dot_dimension_numbers<[1], [1], [0], [0], [0, 0, 1, 0], [], []>} : vector<8x8xf32>, vector<8x8xf32>, vector<8x8xf32> -> vector<8x8xf32>
    %23 = vector.extract_strided_slice %16 {offsets = [0, 16], sizes = [8, 8], strides = [1, 1]} : vector<16x96xf32> to vector<8x8xf32>
    %24 = vector.extract_strided_slice %16 {offsets = [0, 48], sizes = [8, 8], strides = [1, 1]} : vector<16x96xf32> to vector<8x8xf32>
    %cst_7 = arith.constant dense<0.000000e+00> : vector<8x8xf32>
    %25 = tpu.matmul %23, %24, %cst_7 {dimension_numbers = #tpu.dot_dimension_numbers<[1], [1], [0], [0], [0, 0, 1, 0], [], []>} : vector<8x8xf32>, vector<8x8xf32>, vector<8x8xf32> -> vector<8x8xf32>
    %26 = vector.extract_strided_slice %16 {offsets = [0, 24], sizes = [8, 8], strides = [1, 1]} : vector<16x96xf32> to vector<8x8xf32>
    %27 = vector.extract_strided_slice %16 {offsets = [0, 56], sizes = [8, 8], strides = [1, 1]} : vector<16x96xf32> to vector<8x8xf32>
    %cst_8 = arith.constant dense<0.000000e+00> : vector<8x8xf32>
    %28 = tpu.matmul %26, %27, %cst_8 {dimension_numbers = #tpu.dot_dimension_numbers<[1], [1], [0], [0], [0, 0, 1, 0], [], []>} : vector<8x8xf32>, vector<8x8xf32>, vector<8x8xf32> -> vector<8x8xf32>
    %29 = vector.extract_strided_slice %16 {offsets = [8, 0], sizes = [8, 8], strides = [1, 1]} : vector<16x96xf32> to vector<8x8xf32>
    %30 = vector.extract_strided_slice %16 {offsets = [8, 32], sizes = [8, 8], strides = [1, 1]} : vector<16x96xf32> to vector<8x8xf32>
    %cst_9 = arith.constant dense<0.000000e+00> : vector<8x8xf32>
    %31 = tpu.matmul %29, %30, %cst_9 {dimension_numbers = #tpu.dot_dimension_numbers<[1], [1], [0], [0], [0, 0, 1, 0], [], []>} : vector<8x8xf32>, vector<8x8xf32>, vector<8x8xf32> -> vector<8x8xf32>
    %32 = vector.extract_strided_slice %16 {offsets = [8, 8], sizes = [8, 8], strides = [1, 1]} : vector<16x96xf32> to vector<8x8xf32>
    %33 = vector.extract_strided_slice %16 {offsets = [8, 40], sizes = [8, 8], strides = [1, 1]} : vector<16x96xf32> to vector<8x8xf32>
    %cst_10 = arith.constant dense<0.000000e+00> : vector<8x8xf32>
    %34 = tpu.matmul %32, %33, %cst_10 {dimension_numbers = #tpu.dot_dimension_numbers<[1], [1], [0], [0], [0, 0, 1, 0], [], []>} : vector<8x8xf32>, vector<8x8xf32>, vector<8x8xf32> -> vector<8x8xf32>
    %35 = vector.extract_strided_slice %16 {offsets = [8, 16], sizes = [8, 8], strides = [1, 1]} : vector<16x96xf32> to vector<8x8xf32>
    %36 = vector.extract_strided_slice %16 {offsets = [8, 48], sizes = [8, 8], strides = [1, 1]} : vector<16x96xf32> to vector<8x8xf32>
    %cst_11 = arith.constant dense<0.000000e+00> : vector<8x8xf32>
    %37 = tpu.matmul %35, %36, %cst_11 {dimension_numbers = #tpu.dot_dimension_numbers<[1], [1], [0], [0], [0, 0, 1, 0], [], []>} : vector<8x8xf32>, vector<8x8xf32>, vector<8x8xf32> -> vector<8x8xf32>
    %38 = vector.extract_strided_slice %16 {offsets = [8, 24], sizes = [8, 8], strides = [1, 1]} : vector<16x96xf32> to vector<8x8xf32>
    %39 = vector.extract_strided_slice %16 {offsets = [8, 56], sizes = [8, 8], strides = [1, 1]} : vector<16x96xf32> to vector<8x8xf32>
    %cst_12 = arith.constant dense<0.000000e+00> : vector<8x8xf32>
    %40 = tpu.matmul %38, %39, %cst_12 {dimension_numbers = #tpu.dot_dimension_numbers<[1], [1], [0], [0], [0, 0, 1, 0], [], []>} : vector<8x8xf32>, vector<8x8xf32>, vector<8x8xf32> -> vector<8x8xf32>
    %41 = tpu.concatenate %19, %22, %25, %28, %31, %34, %37, %40 in 0 : vector<8x8xf32>, vector<8x8xf32>, vector<8x8xf32>, vector<8x8xf32>, vector<8x8xf32>, vector<8x8xf32>, vector<8x8xf32>, vector<8x8xf32> -> vector<64x8xf32>
    %cst_13 = arith.constant dense<0xFF800000> : vector<64xf32>
    %42 = vector.multi_reduction <maximumf>, %41, %cst_13 [1] : vector<64x8xf32> to vector<64xf32>
    %43 = vector.shape_cast %42 : vector<64xf32> to vector<64x1xf32>
    %44 = vector.broadcast %43 : vector<64x1xf32> to vector<64x8xf32>
    %45 = arith.subf %41, %44 : vector<64x8xf32>
    %46 = math.exp %45 : vector<64x8xf32>
    %cst_14 = arith.constant dense<0.000000e+00> : vector<64xf32>
    %47 = vector.multi_reduction <add>, %46, %cst_14 [1] : vector<64x8xf32> to vector<64xf32>
    %48 = vector.shape_cast %47 : vector<64xf32> to vector<64x1xf32>
    %49 = tpu.reciprocal %48 {approx = true} : vector<64x1xf32> -> vector<64x1xf32>
    %50 = vector.broadcast %49 : vector<64x1xf32> to vector<64x8xf32>
    %51 = arith.mulf %46, %50 : vector<64x8xf32>
    %52 = vector.extract_strided_slice %16 {offsets = [0, 64], sizes = [8, 8], strides = [1, 1]} : vector<16x96xf32> to vector<8x8xf32>
    %53 = vector.extract_strided_slice %51 {offsets = [0, 0], sizes = [8, 8], strides = [1, 1]} : vector<64x8xf32> to vector<8x8xf32>
    %cst_15 = arith.constant dense<0.000000e+00> : vector<8x8xf32>
    %54 = tpu.matmul %53, %52, %cst_15 {dimension_numbers = #tpu.dot_dimension_numbers<[1], [0], [0], [1], [0, 0, 1, 1], [], []>} : vector<8x8xf32>, vector<8x8xf32>, vector<8x8xf32> -> vector<8x8xf32>
    %55 = vector.extract_strided_slice %16 {offsets = [0, 72], sizes = [8, 8], strides = [1, 1]} : vector<16x96xf32> to vector<8x8xf32>
    %56 = vector.extract_strided_slice %51 {offsets = [8, 0], sizes = [8, 8], strides = [1, 1]} : vector<64x8xf32> to vector<8x8xf32>
    %cst_16 = arith.constant dense<0.000000e+00> : vector<8x8xf32>
    %57 = tpu.matmul %56, %55, %cst_16 {dimension_numbers = #tpu.dot_dimension_numbers<[1], [0], [0], [1], [0, 0, 1, 1], [], []>} : vector<8x8xf32>, vector<8x8xf32>, vector<8x8xf32> -> vector<8x8xf32>
    %58 = vector.extract_strided_slice %16 {offsets = [0, 80], sizes = [8, 8], strides = [1, 1]} : vector<16x96xf32> to vector<8x8xf32>
    %59 = vector.extract_strided_slice %51 {offsets = [16, 0], sizes = [8, 8], strides = [1, 1]} : vector<64x8xf32> to vector<8x8xf32>
    %cst_17 = arith.constant dense<0.000000e+00> : vector<8x8xf32>
    %60 = tpu.matmul %59, %58, %cst_17 {dimension_numbers = #tpu.dot_dimension_numbers<[1], [0], [0], [1], [0, 0, 1, 1], [], []>} : vector<8x8xf32>, vector<8x8xf32>, vector<8x8xf32> -> vector<8x8xf32>
    %61 = vector.extract_strided_slice %16 {offsets = [0, 88], sizes = [8, 8], strides = [1, 1]} : vector<16x96xf32> to vector<8x8xf32>
    %62 = vector.extract_strided_slice %51 {offsets = [24, 0], sizes = [8, 8], strides = [1, 1]} : vector<64x8xf32> to vector<8x8xf32>
    %cst_18 = arith.constant dense<0.000000e+00> : vector<8x8xf32>
    %63 = tpu.matmul %62, %61, %cst_18 {dimension_numbers = #tpu.dot_dimension_numbers<[1], [0], [0], [1], [0, 0, 1, 1], [], []>} : vector<8x8xf32>, vector<8x8xf32>, vector<8x8xf32> -> vector<8x8xf32>
    %64 = tpu.concatenate %54, %57, %60, %63 in 1 : vector<8x8xf32>, vector<8x8xf32>, vector<8x8xf32>, vector<8x8xf32> -> vector<8x32xf32>
    %65 = vector.extract_strided_slice %16 {offsets = [8, 64], sizes = [8, 8], strides = [1, 1]} : vector<16x96xf32> to vector<8x8xf32>
    %66 = vector.extract_strided_slice %51 {offsets = [32, 0], sizes = [8, 8], strides = [1, 1]} : vector<64x8xf32> to vector<8x8xf32>
    %cst_19 = arith.constant dense<0.000000e+00> : vector<8x8xf32>
    %67 = tpu.matmul %66, %65, %cst_19 {dimension_numbers = #tpu.dot_dimension_numbers<[1], [0], [0], [1], [0, 0, 1, 1], [], []>} : vector<8x8xf32>, vector<8x8xf32>, vector<8x8xf32> -> vector<8x8xf32>
    %68 = vector.extract_strided_slice %16 {offsets = [8, 72], sizes = [8, 8], strides = [1, 1]} : vector<16x96xf32> to vector<8x8xf32>
    %69 = vector.extract_strided_slice %51 {offsets = [40, 0], sizes = [8, 8], strides = [1, 1]} : vector<64x8xf32> to vector<8x8xf32>
    %cst_20 = arith.constant dense<0.000000e+00> : vector<8x8xf32>
    %70 = tpu.matmul %69, %68, %cst_20 {dimension_numbers = #tpu.dot_dimension_numbers<[1], [0], [0], [1], [0, 0, 1, 1], [], []>} : vector<8x8xf32>, vector<8x8xf32>, vector<8x8xf32> -> vector<8x8xf32>
    %71 = vector.extract_strided_slice %16 {offsets = [8, 80], sizes = [8, 8], strides = [1, 1]} : vector<16x96xf32> to vector<8x8xf32>
    %72 = vector.extract_strided_slice %51 {offsets = [48, 0], sizes = [8, 8], strides = [1, 1]} : vector<64x8xf32> to vector<8x8xf32>
    %cst_21 = arith.constant dense<0.000000e+00> : vector<8x8xf32>
    %73 = tpu.matmul %72, %71, %cst_21 {dimension_numbers = #tpu.dot_dimension_numbers<[1], [0], [0], [1], [0, 0, 1, 1], [], []>} : vector<8x8xf32>, vector<8x8xf32>, vector<8x8xf32> -> vector<8x8xf32>
    %74 = vector.extract_strided_slice %16 {offsets = [8, 88], sizes = [8, 8], strides = [1, 1]} : vector<16x96xf32> to vector<8x8xf32>
    %75 = vector.extract_strided_slice %51 {offsets = [56, 0], sizes = [8, 8], strides = [1, 1]} : vector<64x8xf32> to vector<8x8xf32>
    %cst_22 = arith.constant dense<0.000000e+00> : vector<8x8xf32>
    %76 = tpu.matmul %75, %74, %cst_22 {dimension_numbers = #tpu.dot_dimension_numbers<[1], [0], [0], [1], [0, 0, 1, 1], [], []>} : vector<8x8xf32>, vector<8x8xf32>, vector<8x8xf32> -> vector<8x8xf32>
    %77 = tpu.concatenate %67, %70, %73, %76 in 1 : vector<8x8xf32>, vector<8x8xf32>, vector<8x8xf32>, vector<8x8xf32> -> vector<8x32xf32>
    %78 = tpu.concatenate %64, %77 in 0 : vector<8x32xf32>, vector<8x32xf32> -> vector<16x32xf32>
    %cst_23 = arith.constant dense<0.000000e+00> : vector<16x32xf32>
    %79 = tpu.matmul %78, %3, %cst_23 {dimension_numbers = #tpu.dot_dimension_numbers<[1], [0], [0], [1], [0, 0, 1, 1], [], []>} : vector<16x32xf32>, vector<32x32xf32>, vector<16x32xf32> -> vector<16x32xf32>
    %80 = vector.broadcast %7 : vector<1x32xf32> to vector<16x32xf32>
    %81 = arith.addf %79, %80 : vector<16x32xf32>
    %82 = arith.addf %13, %81 : vector<16x32xf32>
    %cst_24 = arith.constant dense<0.000000e+00> : vector<16xf32>
    %83 = vector.multi_reduction <add>, %82, %cst_24 [1] : vector<16x32xf32> to vector<16xf32>
    %84 = vector.shape_cast %83 : vector<16xf32> to vector<16x1xf32>
    %cst_25 = arith.constant 3.200000e+01 : f32
    %85 = vector.broadcast %cst_25 : f32 to vector<16x1xf32>
    %86 = arith.divf %84, %85 : vector<16x1xf32>
    %87 = vector.broadcast %86 : vector<16x1xf32> to vector<16x32xf32>
    %88 = arith.subf %82, %87 : vector<16x32xf32>
    %89 = arith.mulf %88, %88 : vector<16x32xf32>
    %cst_26 = arith.constant dense<0.000000e+00> : vector<16xf32>
    %90 = vector.multi_reduction <add>, %89, %cst_26 [1] : vector<16x32xf32> to vector<16xf32>
    %91 = vector.shape_cast %90 : vector<16xf32> to vector<16x1xf32>
    %cst_27 = arith.constant 0.0322580636 : f32
    %92 = vector.broadcast %cst_27 : f32 to vector<16x1xf32>
    %93 = arith.mulf %91, %92 : vector<16x1xf32>
    %94 = math.sqrt %93 : vector<16x1xf32>
    %cst_28 = arith.constant 9.99999997E-7 : f32
    %95 = vector.broadcast %cst_28 : f32 to vector<16x1xf32>
    %96 = arith.addf %94, %95 : vector<16x1xf32>
    %97 = tpu.reciprocal %96 : vector<16x1xf32> -> vector<16x1xf32>
    %98 = vector.broadcast %97 : vector<16x1xf32> to vector<16x32xf32>
    %99 = arith.mulf %88, %98 : vector<16x32xf32>
    %100 = vector.broadcast %9 : vector<1x32xf32> to vector<16x32xf32>
    %101 = arith.mulf %100, %99 : vector<16x32xf32>
    %102 = vector.broadcast %10 : vector<1x32xf32> to vector<16x32xf32>
    %103 = arith.addf %101, %102 : vector<16x32xf32>
    %cst_29 = arith.constant dense<0.000000e+00> : vector<16x64xf32>
    %104 = tpu.matmul %103, %4, %cst_29 {dimension_numbers = #tpu.dot_dimension_numbers<[1], [0], [0], [1], [0, 0, 1, 1], [], []>} : vector<16x32xf32>, vector<32x64xf32>, vector<16x64xf32> -> vector<16x64xf32>
    %105 = vector.broadcast %6 : vector<1x64xf32> to vector<16x64xf32>
    %106 = arith.addf %104, %105 : vector<16x64xf32>
    %cst_30 = arith.constant 0.000000e+00 : f32
    %107 = vector.broadcast %cst_30 : f32 to vector<16x64xf32>
    %108 = arith.maximumf %106, %107 : vector<16x64xf32>
    %c0_31 = arith.constant 0 : index
    %c0_32 = arith.constant 0 : index
    %109 = vector.load %arg3[%c0_31, %c0_32] : memref<64x32xf32, #tpu.memory_space<vmem>>, vector<64x32xf32>
    %cst_33 = arith.constant dense<0.000000e+00> : vector<16x32xf32>
    %110 = tpu.matmul %108, %109, %cst_33 {dimension_numbers = #tpu.dot_dimension_numbers<[1], [0], [0], [1], [0, 0, 1, 1], [], []>} : vector<16x64xf32>, vector<64x32xf32>, vector<16x32xf32> -> vector<16x32xf32>
    %111 = vector.broadcast %8 : vector<1x32xf32> to vector<16x32xf32>
    %112 = arith.addf %110, %111 : vector<16x32xf32>
    %113 = arith.addf %103, %112 : vector<16x32xf32>
    %cst_34 = arith.constant dense<0.000000e+00> : vector<16xf32>
    %114 = vector.multi_reduction <add>, %113, %cst_34 [1] : vector<16x32xf32> to vector<16xf32>
    %115 = vector.shape_cast %114 : vector<16xf32> to vector<16x1xf32>
    %cst_35 = arith.constant 3.200000e+01 : f32
    %116 = vector.broadcast %cst_35 : f32 to vector<16x1xf32>
    %117 = arith.divf %115, %116 : vector<16x1xf32>
    %118 = vector.broadcast %117 : vector<16x1xf32> to vector<16x32xf32>
    %119 = arith.subf %113, %118 : vector<16x32xf32>
    %120 = arith.mulf %119, %119 : vector<16x32xf32>
    %cst_36 = arith.constant dense<0.000000e+00> : vector<16xf32>
    %121 = vector.multi_reduction <add>, %120, %cst_36 [1] : vector<16x32xf32> to vector<16xf32>
    %122 = vector.shape_cast %121 : vector<16xf32> to vector<16x1xf32>
    %cst_37 = arith.constant 0.0322580636 : f32
    %123 = vector.broadcast %cst_37 : f32 to vector<16x1xf32>
    %124 = arith.mulf %122, %123 : vector<16x1xf32>
    %125 = math.sqrt %124 : vector<16x1xf32>
    %cst_38 = arith.constant 9.99999997E-7 : f32
    %126 = vector.broadcast %cst_38 : f32 to vector<16x1xf32>
    %127 = arith.addf %125, %126 : vector<16x1xf32>
    %128 = tpu.reciprocal %127 : vector<16x1xf32> -> vector<16x1xf32>
    %129 = vector.broadcast %128 : vector<16x1xf32> to vector<16x32xf32>
    %130 = arith.mulf %119, %129 : vector<16x32xf32>
    %131 = vector.broadcast %11 : vector<1x32xf32> to vector<16x32xf32>
    %132 = arith.mulf %131, %130 : vector<16x32xf32>
    %133 = vector.broadcast %12 : vector<1x32xf32> to vector<16x32xf32>
    %134 = arith.addf %132, %133 : vector<16x32xf32>
    %c0_39 = arith.constant 0 : index
    %c0_40 = arith.constant 0 : index
    %135 = vector.load %arg5[%c0_39, %c0_40] : memref<16x32xf32, #tpu.memory_space<vmem>>, vector<16x32xf32>
    tpu.vector_store %arg5[%c0_39, %c0_40], %134 {strides = array<i32>} : memref<16x32xf32, #tpu.memory_space<vmem>>, vector<16x32xf32>,
    return
  }
  func.func @transform_0(%arg0: i32) -> (i32, i32) {
    %c0_i32 = arith.constant 0 : i32
    %c0_i32_0 = arith.constant 0 : i32
    %c0_i32_1 = arith.constant 0 : i32
    return %c0_i32, %c0_i32_0 : i32, i32
  }
  func.func @transform_1(%arg0: i32) -> (i32, i32) {
    %c0_i32 = arith.constant 0 : i32
    %c0_i32_0 = arith.constant 0 : i32
    %c0_i32_1 = arith.constant 0 : i32
    return %c0_i32, %c0_i32_0 : i32, i32
  }
  func.func @transform_2(%arg0: i32) -> (i32, i32) {
    %c0_i32 = arith.constant 0 : i32
    %c0_i32_0 = arith.constant 0 : i32
    %c0_i32_1 = arith.constant 0 : i32
    return %c0_i32, %c0_i32_0 : i32, i32
  }
  func.func @transform_3(%arg0: i32) -> (i32, i32) {
    %c0_i32 = arith.constant 0 : i32
    %c0_i32_0 = arith.constant 0 : i32
    %c0_i32_1 = arith.constant 0 : i32
    return %c0_i32, %c0_i32_0 : i32, i32
  }
  func.func @transform_4(%arg0: i32) -> (i32, i32) {
    %c0_i32 = arith.constant 0 : i32
    %c0_i32_0 = arith.constant 0 : i32
    %c0_i32_1 = arith.constant 0 : i32
    return %c0_i32, %c0_i32_0 : i32, i32
  }
}

</mosaic_0001>

<llo_original>
// kernel: tpu_custom_call.1
$region0: #{tpu_custom_call.1}
  #allocation0 [shape = 'u32[]', space=smem, size = 0x4, offset = 0x4, fixed_abs, tag = 'smem constant byte address 0x4 - core index']
  #allocation1 [shape = 'u32[144,128]{1,0:T(1,128)}', space=vmem, size = 0x12000, scoped, tag = 'internal scratch']
  %s0 = inlined_call_operand.vmem [shape: f32[16,32], index: 0, kind: input, shape index: {}]
  %s1 = inlined_call_operand.vmem [shape: f32[32,192], index: 1, kind: input, shape index: {}]
  %s2 = inlined_call_operand.vmem [shape: f32[64,32], index: 2, kind: input, shape index: {}]
  %s3 = inlined_call_operand.vmem [shape: f32[8,128], index: 3, kind: input, shape index: {}]
  %s4 = inlined_call_operand.hbm [shape: f32[16,32], index: 4, kind: output, shape index: {}]
  %s5 = sld [smem:[#allocation0]]
  $region26: #{tpu_custom_call.1} parent=0
    _
  %s7 = ssub.s32 1, %s5
  %s8 = scalar_select 0, %s7, %s5
  $region1: #{tpu_custom_call.1} parent=0
    #allocation2 [shape = 'u8[8192]{0}', space=vmem, size = 0x2000, scoped, tag = 'output window, operand 0, single buffered']
    #allocation3 [shape = 's32[1]{0}', space=sflag, size = 0x4, scoped, tag = 'scoped memory for tpu_custom_call.1']
    %9 = vsyncpa [#allocation3], 0
    // Predicated region
    $region2: #{tpu_custom_call.1} parent=1 // pred_check
      _
    $region3: #{tpu_custom_call.1} parent=1 // pred_check_branch
      %11 = sbr.rel (0) target = $region5
    $region4: #{tpu_custom_call.1} parent=1 // pred_region
      _
    $region5: #{tpu_custom_call.1} parent=1 // pred_fallthru
      _
    // Predicated region
    $region6: #{tpu_custom_call.1} parent=1 // pred_check
      _
    $region7: #{tpu_custom_call.1} parent=1 // pred_check_branch
      %13 = sbr.rel (0) target = $region9
    $region8: #{tpu_custom_call.1} parent=1 // pred_region
      _
    $region9: #{tpu_custom_call.1} parent=1 // pred_fallthru
      _
    // Predicated region
    $region10: #{tpu_custom_call.1} parent=1 // pred_check
      _
    $region11: #{tpu_custom_call.1} parent=1 // pred_check_branch
      %15 = sbr.rel (0) target = $region13
    $region12: #{tpu_custom_call.1} parent=1 // pred_region
      _
    $region13: #{tpu_custom_call.1} parent=1 // pred_fallthru
      _
    // Predicated region
    $region14: #{tpu_custom_call.1} parent=1 // pred_check
      _
    $region15: #{tpu_custom_call.1} parent=1 // pred_check_branch
      %17 = sbr.rel (0) target = $region17
    $region16: #{tpu_custom_call.1} parent=1 // pred_region
      _
    $region17: #{tpu_custom_call.1} parent=1 // pred_fallthru
      _
    %v18 = vld [vmem:[%s1] sm:$0xff]
    %v19 = vld [vmem:[%s1 + $0x8] sm:$0xff]
    %v20 = vld [vmem:[%s1 + $0x10] sm:$0xff]
    %v21 = vld [vmem:[%s1 + $0x18] sm:$0xff]
    %v22 = vld [vmem:[%s1 + $0x20] sm:$0xff]
    %v23 = vld [vmem:[%s1 + $0x28] sm:$0xff]
    %v24 = vld [vmem:[%s1 + $0x30] sm:$0xff]
    %v25 = vld [vmem:[%s1 + $0x38] sm:$0xff]
    %v26 = vld [vmem:[%s3] sm:$0xff]
    %v27 = vld [vmem:[%s0] sm:$0xff]
    %v28 = vld [vmem:[%s0 + $0x8] sm:$0xff]
    %v29 = vlaneseq
    %v30 = vshrl.u32 %v29, 7
    %v31 = vsub.s32 0, %v30
    %v32 = vrot.slane %v26, %v31
    %vm33 = vcmask 261120
    %v35 = vsel %vm33, %v27, 0
    %v38 = vsel %vm33, %v28, 0
    %40 = vmatprep.subr.mxu0 0.0
    %41 = vmatpush1.msra.mxu0 %v18
    %42 = vmatprep.subr.mxu0 0.0
    %43 = vmatpush1.msra.mxu0 %v20
    %44 = vmatprep.subr.mxu0 0.0
    %45 = vmatpush1.msra.mxu0 %v22
    %46 = vmatprep.subr.mxu0 0.0
    %47 = vmatpush1.msra.mxu0 %v24
    %48 = vmatprep.subr.mxu0 0.0
    %49 = vmatpush1.msra.mxu0 0.0
    %50 = vmatprep.subr.mxu0 0.0
    %51 = vmatpush1.msra.mxu0 0.0
    %52 = vmatprep.subr.mxu0 0.0
    %53 = vmatpush1.msra.mxu0 0.0
    %54 = vmatprep.subr.mxu0 0.0
    %55 = vmatpush1.msra.mxu0 0.0
    %56 = vmatprep.subr.mxu0 0.0
    %57 = vmatpush1.msra.mxu0 0.0
    %58 = vmatprep.subr.mxu0 0.0
    %59 = vmatpush1.msra.mxu0 0.0
    %60 = vmatprep.subr.mxu0 0.0
    %61 = vmatpush1.msra.mxu0 0.0
    %62 = vmatprep.subr.mxu0 0.0
    %63 = vmatpush1.msra.mxu0 0.0
    %64 = vmatprep.subr.mxu0 0.0
    %65 = vmatpush1.msra.mxu0 0.0
    %66 = vmatprep.subr.mxu0 0.0
    %67 = vmatpush1.msra.mxu0 0.0
    %68 = vmatprep.subr.mxu0 0.0
    %69 = vmatpush1.msra.mxu0 0.0
    %70 = vmatprep.subr.mxu0 0.0
    %71 = vmatpush1.msra.mxu0 0.0
    %72 = vmatprep.subr.mxu0 0.0
    %73 = vmatpush1.msra.mxu0 0.0
    %74 = vmatprep.subr.mxu0 0.0
    %75 = vmatpush1.msra.mxu0 0.0
    %76 = vmatprep.subr.mxu0 0.0
    %77 = vmatpush1.msra.mxu0 0.0
    %78 = vmatprep.subr.mxu0 0.0
    %79 = vmatpush1.msra.mxu0 0.0
    %80 = vmatprep.subr.mxu0 0.0
    %81 = vmatpush1.msra.mxu0 0.0
    %82 = vmatprep.subr.mxu0 0.0
    %83 = vmatpush1.msra.mxu0 0.0
    %84 = vmatprep.subr.mxu0 0.0
    %85 = vmatpush1.msra.mxu0 0.0
    %86 = vmatprep.subr.mxu0 0.0
    %87 = vmatpush1.msra.mxu0 0.0
    %88 = vmatprep.subr.mxu0 0.0
    %89 = vmatpush1.msra.mxu0 0.0
    %90 = vmatprep.subr.mxu0 0.0
    %91 = vmatpush1.msra.mxu0 0.0
    %92 = vmatprep.subr.mxu0 0.0
    %93 = vmatpush1.msra.mxu0 0.0
    %94 = vmatprep.subr.mxu0 0.0
    %95 = vmatpush1.msra.mxu0 0.0
    %96 = vmatprep.subr.mxu0 0.0
    %97 = vmatpush1.msra.mxu0 0.0
    %98 = vmatprep.subr.mxu0 0.0
    %99 = vmatpush1.msra.mxu0 0.0
    %100 = vmatprep.subr.mxu0 0.0
    %101 = vmatpush1.msra.mxu0 0.0
    %102 = vmatprep.subr.mxu0 0.0
    %103 = vmatpush1.msra.mxu0 0.0
    %104 = vmatprep.mubr.f32.mxu0 0.0
    %105 = vmatmul.mubr.f32.gmra.mrb[0].mxu0 %v35
    %v106 = vpop.f32.mrb[0].mxu0
    %v107 = vadd.f32 %v32, %v106
    %v108 = vpop.f32.mrb[0].mxu0
    %109 = vmatprep.mubr.f32.mxu0 0.0
    %110 = vmatmul.mubr.f32.gmra.mrb[0].mxu0 %v38
    %v111 = vpop.f32.mrb[0].mxu0
    %v112 = vadd.f32 %v32, %v111
    %v113 = vpop.f32.mrb[0].mxu0
    %114 = vdwg.mxu0
    %116 = vrot.lane.b32.xlu0 %v107, 96
    %v117 = vpop.permute.xlu0 %116
    %vm118 = vcmask 64512
    %v119 = vsel %vm118, %v107, 0
    %v121 = vsel %vm118, %v117, 0
    %123 = vmatprep.subr.mxu0 0.0
    %124 = vmatpush1.xpose.msra.mxu0 %v121
    %125 = vmatprep.subr.mxu0 0.0
    %126 = vmatpush1.xpose.msra.mxu0 0.0
    %127 = vmatprep.subr.mxu0 0.0
    %128 = vmatpush1.xpose.msra.mxu0 0.0
    %129 = vmatprep.subr.mxu0 0.0
    %130 = vmatpush1.xpose.msra.mxu0 0.0
    %131 = vmatprep.subr.mxu0 0.0
    %132 = vmatpush1.xpose.msra.mxu0 0.0
    %133 = vmatprep.subr.mxu0 0.0
    %134 = vmatpush1.xpose.msra.mxu0 0.0
    %135 = vmatprep.subr.mxu0 0.0
    %136 = vmatpush1.xpose.msra.mxu0 0.0
    %137 = vmatprep.subr.mxu0 0.0
    %138 = vmatpush1.xpose.msra.mxu0 0.0
    %139 = vmatprep.subr.mxu0 0.0
    %140 = vmatpush1.xpose.msra.mxu0 0.0
    %141 = vmatprep.subr.mxu0 0.0
    %142 = vmatpush1.xpose.msra.mxu0 0.0
    %143 = vmatprep.subr.mxu0 0.0
    %144 = vmatpush1.xpose.msra.mxu0 0.0
    %145 = vmatprep.subr.mxu0 0.0
    %146 = vmatpush1.xpose.msra.mxu0 0.0
    %147 = vmatprep.subr.mxu0 0.0
    %148 = vmatpush1.xpose.msra.mxu0 0.0
    %149 = vmatprep.subr.mxu0 0.0
    %150 = vmatpush1.xpose.msra.mxu0 0.0
    %151 = vmatprep.subr.mxu0 0.0
    %152 = vmatpush1.xpose.msra.mxu0 0.0
    %153 = vmatprep.subr.mxu0 0.0
    %154 = vmatpush1.xpose.msra.mxu0 0.0
    %155 = vmatprep.subr.mxu0 0.0
    %156 = vmatpush1.xpose.msra.mxu0 0.0
    %157 = vmatprep.subr.mxu0 0.0
    %158 = vmatpush1.xpose.msra.mxu0 0.0
    %159 = vmatprep.subr.mxu0 0.0
    %160 = vmatpush1.xpose.msra.mxu0 0.0
    %161 = vmatprep.subr.mxu0 0.0
    %162 = vmatpush1.xpose.msra.mxu0 0.0
    %163 = vmatprep.subr.mxu0 0.0
    %164 = vmatpush1.xpose.msra.mxu0 0.0
    %165 = vmatprep.subr.mxu0 0.0
    %166 = vmatpush1.xpose.msra.mxu0 0.0
    %167 = vmatprep.subr.mxu0 0.0
    %168 = vmatpush1.xpose.msra.mxu0 0.0
    %169 = vmatprep.subr.mxu0 0.0
    %170 = vmatpush1.xpose.msra.mxu0 0.0
    %171 = vmatprep.subr.mxu0 0.0
    %172 = vmatpush1.xpose.msra.mxu0 0.0
    %173 = vmatprep.subr.mxu0 0.0
    %174 = vmatpush1.xpose.msra.mxu0 0.0
    %175 = vmatprep.subr.mxu0 0.0
    %176 = vmatpush1.xpose.msra.mxu0 0.0
    %177 = vmatprep.subr.mxu0 0.0
    %178 = vmatpush1.xpose.msra.mxu0 0.0
    %179 = vmatprep.subr.mxu0 0.0
    %180 = vmatpush1.xpose.msra.mxu0 0.0
    %181 = vmatprep.subr.mxu0 0.0
    %182 = vmatpush1.xpose.msra.mxu0 0.0
    %183 = vmatprep.subr.mxu0 0.0
    %184 = vmatpush1.xpose.msra.mxu0 0.0
    %185 = vmatprep.subr.mxu0 0.0
    %186 = vmatpush1.xpose.msra.mxu0 0.0
    %187 = vmatprep.mubr.f32.mxu0 0.0
    %188 = vmatmul.mubr.f32.gmra.mrb[0].mxu0 %v119
    %v189 = vpop.f32.mrb[0].mxu0
    %v190 = vadd.f32 0.0, %v189
    %v191 = vpop.f32.mrb[0].mxu0
    %192 = vdwg.mxu0
    %193 = vrot.lane.b32.xlu0 %v107, 120
    %v194 = vpop.permute.xlu0 %193
    %195 = vrot.lane.b32.xlu0 %v107, 88
    %v196 = vpop.permute.xlu0 %195
    %v197 = vsel %vm118, %v194, 0
    %v199 = vsel %vm118, %v196, 0
    %201 = vmatprep.subr.mxu0 0.0
    %202 = vmatpush1.xpose.msra.mxu0 %v199
    %203 = vmatprep.subr.mxu0 0.0
    %204 = vmatpush1.xpose.msra.mxu0 0.0
    %205 = vmatprep.subr.mxu0 0.0
    %206 = vmatpush1.xpose.msra.mxu0 0.0
    %207 = vmatprep.subr.mxu0 0.0
    %208 = vmatpush1.xpose.msra.mxu0 0.0
    %209 = vmatprep.subr.mxu0 0.0
    %210 = vmatpush1.xpose.msra.mxu0 0.0
    %211 = vmatprep.subr.mxu0 0.0
    %212 = vmatpush1.xpose.msra.mxu0 0.0
    %213 = vmatprep.subr.mxu0 0.0
    %214 = vmatpush1.xpose.msra.mxu0 0.0
    %215 = vmatprep.subr.mxu0 0.0
    %216 = vmatpush1.xpose.msra.mxu0 0.0
    %217 = vmatprep.subr.mxu0 0.0
    %218 = vmatpush1.xpose.msra.mxu0 0.0
    %219 = vmatprep.subr.mxu0 0.0
    %220 = vmatpush1.xpose.msra.mxu0 0.0
    %221 = vmatprep.subr.mxu0 0.0
    %222 = vmatpush1.xpose.msra.mxu0 0.0
    %223 = vmatprep.subr.mxu0 0.0
    %224 = vmatpush1.xpose.msra.mxu0 0.0
    %225 = vmatprep.subr.mxu0 0.0
    %226 = vmatpush1.xpose.msra.mxu0 0.0
    %227 = vmatprep.subr.mxu0 0.0
    %228 = vmatpush1.xpose.msra.mxu0 0.0
    %229 = vmatprep.subr.mxu0 0.0
    %230 = vmatpush1.xpose.msra.mxu0 0.0
    %231 = vmatprep.subr.mxu0 0.0
    %232 = vmatpush1.xpose.msra.mxu0 0.0
    %233 = vmatprep.subr.mxu0 0.0
    %234 = vmatpush1.xpose.msra.mxu0 0.0
    %235 = vmatprep.subr.mxu0 0.0
    %236 = vmatpush1.xpose.msra.mxu0 0.0
    %237 = vmatprep.subr.mxu0 0.0
    %238 = vmatpush1.xpose.msra.mxu0 0.0
    %239 = vmatprep.subr.mxu0 0.0
    %240 = vmatpush1.xpose.msra.mxu0 0.0
    %241 = vmatprep.subr.mxu0 0.0
    %242 = vmatpush1.xpose.msra.mxu0 0.0
    %243 = vmatprep.subr.mxu0 0.0
    %244 = vmatpush1.xpose.msra.mxu0 0.0
    %245 = vmatprep.subr.mxu0 0.0
    %246 = vmatpush1.xpose.msra.mxu0 0.0
    %247 = vmatprep.subr.mxu0 0.0
    %248 = vmatpush1.xpose.msra.mxu0 0.0
    %249 = vmatprep.subr.mxu0 0.0
    %250 = vmatpush1.xpose.msra.mxu0 0.0
    %251 = vmatprep.subr.mxu0 0.0
    %252 = vmatpush1.xpose.msra.mxu0 0.0
    %253 = vmatprep.subr.mxu0 0.0
    %254 = vmatpush1.xpose.msra.mxu0 0.0
    %255 = vmatprep.subr.mxu0 0.0
    %256 = vmatpush1.xpose.msra.mxu0 0.0
    %257 = vmatprep.subr.mxu0 0.0
    %258 = vmatpush1.xpose.msra.mxu0 0.0
    %259 = vmatprep.subr.mxu0 0.0
    %260 = vmatpush1.xpose.msra.mxu0 0.0
    %261 = vmatprep.subr.mxu0 0.0
    %262 = vmatpush1.xpose.msra.mxu0 0.0
    %263 = vmatprep.subr.mxu0 0.0
    %264 = vmatpush1.xpose.msra.mxu0 0.0
    %265 = vmatprep.mubr.f32.mxu0 0.0
    %266 = vmatmul.mubr.f32.gmra.mrb[0].mxu0 %v197
    %v267 = vpop.f32.mrb[0].mxu0
    %v268 = vadd.f32 0.0, %v267
    %v269 = vpop.f32.mrb[0].mxu0
    %270 = vdwg.mxu0
    %271 = vrot.lane.b32.xlu0 %v107, 112
    %v272 = vpop.permute.xlu0 %271
    %273 = vrot.lane.b32.xlu0 %v107, 80
    %v274 = vpop.permute.xlu0 %273
    %v275 = vsel %vm118, %v272, 0
    %v277 = vsel %vm118, %v274, 0
    %279 = vmatprep.subr.mxu0 0.0
    %280 = vmatpush1.xpose.msra.mxu0 %v277
    %281 = vmatprep.subr.mxu0 0.0
    %282 = vmatpush1.xpose.msra.mxu0 0.0
    %283 = vmatprep.subr.mxu0 0.0
    %284 = vmatpush1.xpose.msra.mxu0 0.0
    %285 = vmatprep.subr.mxu0 0.0
    %286 = vmatpush1.xpose.msra.mxu0 0.0
    %287 = vmatprep.subr.mxu0 0.0
    %288 = vmatpush1.xpose.msra.mxu0 0.0
    %289 = vmatprep.subr.mxu0 0.0
    %290 = vmatpush1.xpose.msra.mxu0 0.0
    %291 = vmatprep.subr.mxu0 0.0
    %292 = vmatpush1.xpose.msra.mxu0 0.0
    %293 = vmatprep.subr.mxu0 0.0
    %294 = vmatpush1.xpose.msra.mxu0 0.0
    %295 = vmatprep.subr.mxu0 0.0
    %296 = vmatpush1.xpose.msra.mxu0 0.0
    %297 = vmatprep.subr.mxu0 0.0
    %298 = vmatpush1.xpose.msra.mxu0 0.0
    %299 = vmatprep.subr.mxu0 0.0
    %300 = vmatpush1.xpose.msra.mxu0 0.0
    %301 = vmatprep.subr.mxu0 0.0
    %302 = vmatpush1.xpose.msra.mxu0 0.0
    %303 = vmatprep.subr.mxu0 0.0
    %304 = vmatpush1.xpose.msra.mxu0 0.0
    %305 = vmatprep.subr.mxu0 0.0
    %306 = vmatpush1.xpose.msra.mxu0 0.0
    %307 = vmatprep.subr.mxu0 0.0
    %308 = vmatpush1.xpose.msra.mxu0 0.0
    %309 = vmatprep.subr.mxu0 0.0
    %310 = vmatpush1.xpose.msra.mxu0 0.0
    %311 = vmatprep.subr.mxu0 0.0
    %312 = vmatpush1.xpose.msra.mxu0 0.0
    %313 = vmatprep.subr.mxu0 0.0
    %314 = vmatpush1.xpose.msra.mxu0 0.0
    %315 = vmatprep.subr.mxu0 0.0
    %316 = vmatpush1.xpose.msra.mxu0 0.0
    %317 = vmatprep.subr.mxu0 0.0
    %318 = vmatpush1.xpose.msra.mxu0 0.0
    %319 = vmatprep.subr.mxu0 0.0
    %320 = vmatpush1.xpose.msra.mxu0 0.0
    %321 = vmatprep.subr.mxu0 0.0
    %322 = vmatpush1.xpose.msra.mxu0 0.0
    %323 = vmatprep.subr.mxu0 0.0
    %324 = vmatpush1.xpose.msra.mxu0 0.0
    %325 = vmatprep.subr.mxu0 0.0
    %326 = vmatpush1.xpose.msra.mxu0 0.0
    %327 = vmatprep.subr.mxu0 0.0
    %328 = vmatpush1.xpose.msra.mxu0 0.0
    %329 = vmatprep.subr.mxu0 0.0
    %330 = vmatpush1.xpose.msra.mxu0 0.0
    %331 = vmatprep.subr.mxu0 0.0
    %332 = vmatpush1.xpose.msra.mxu0 0.0
    %333 = vmatprep.subr.mxu0 0.0
    %334 = vmatpush1.xpose.msra.mxu0 0.0
    %335 = vmatprep.subr.mxu0 0.0
    %336 = vmatpush1.xpose.msra.mxu0 0.0
    %337 = vmatprep.subr.mxu0 0.0
    %338 = vmatpush1.xpose.msra.mxu0 0.0
    %339 = vmatprep.subr.mxu0 0.0
    %340 = vmatpush1.xpose.msra.mxu0 0.0
    %341 = vmatprep.subr.mxu0 0.0
    %342 = vmatpush1.xpose.msra.mxu0 0.0
    %343 = vmatprep.mubr.f32.mxu0 0.0
    %344 = vmatmul.mubr.f32.gmra.mrb[0].mxu0 %v275
    %v345 = vpop.f32.mrb[0].mxu0
    %v346 = vadd.f32 0.0, %v345
    %v347 = vpop.f32.mrb[0].mxu0
    %348 = vdwg.mxu0
    %349 = vrot.lane.b32.xlu0 %v107, 104
    %v350 = vpop.permute.xlu0 %349
    %351 = vrot.lane.b32.xlu0 %v107, 72
    %v352 = vpop.permute.xlu0 %351
    %v353 = vsel %vm118, %v350, 0
    %v355 = vsel %vm118, %v352, 0
    %357 = vmatprep.subr.mxu0 0.0
    %358 = vmatpush1.xpose.msra.mxu0 %v355
    %359 = vmatprep.subr.mxu0 0.0
    %360 = vmatpush1.xpose.msra.mxu0 0.0
    %361 = vmatprep.subr.mxu0 0.0
    %362 = vmatpush1.xpose.msra.mxu0 0.0
    %363 = vmatprep.subr.mxu0 0.0
    %364 = vmatpush1.xpose.msra.mxu0 0.0
    %365 = vmatprep.subr.mxu0 0.0
    %366 = vmatpush1.xpose.msra.mxu0 0.0
    %367 = vmatprep.subr.mxu0 0.0
    %368 = vmatpush1.xpose.msra.mxu0 0.0
    %369 = vmatprep.subr.mxu0 0.0
    %370 = vmatpush1.xpose.msra.mxu0 0.0
    %371 = vmatprep.subr.mxu0 0.0
    %372 = vmatpush1.xpose.msra.mxu0 0.0
    %373 = vmatprep.subr.mxu0 0.0
    %374 = vmatpush1.xpose.msra.mxu0 0.0
    %375 = vmatprep.subr.mxu0 0.0
    %376 = vmatpush1.xpose.msra.mxu0 0.0
    %377 = vmatprep.subr.mxu0 0.0
    %378 = vmatpush1.xpose.msra.mxu0 0.0
    %379 = vmatprep.subr.mxu0 0.0
    %380 = vmatpush1.xpose.msra.mxu0 0.0
    %381 = vmatprep.subr.mxu0 0.0
    %382 = vmatpush1.xpose.msra.mxu0 0.0
    %383 = vmatprep.subr.mxu0 0.0
    %384 = vmatpush1.xpose.msra.mxu0 0.0
    %385 = vmatprep.subr.mxu0 0.0
    %386 = vmatpush1.xpose.msra.mxu0 0.0
    %387 = vmatprep.subr.mxu0 0.0
    %388 = vmatpush1.xpose.msra.mxu0 0.0
    %389 = vmatprep.subr.mxu0 0.0
    %390 = vmatpush1.xpose.msra.mxu0 0.0
    %391 = vmatprep.subr.mxu0 0.0
    %392 = vmatpush1.xpose.msra.mxu0 0.0
    %393 = vmatprep.subr.mxu0 0.0
    %394 = vmatpush1.xpose.msra.mxu0 0.0
    %395 = vmatprep.subr.mxu0 0.0
    %396 = vmatpush1.xpose.msra.mxu0 0.0
    %397 = vmatprep.subr.mxu0 0.0
    %398 = vmatpush1.xpose.msra.mxu0 0.0
    %399 = vmatprep.subr.mxu0 0.0
    %400 = vmatpush1.xpose.msra.mxu0 0.0
    %401 = vmatprep.subr.mxu0 0.0
    %402 = vmatpush1.xpose.msra.mxu0 0.0
    %403 = vmatprep.subr.mxu0 0.0
    %404 = vmatpush1.xpose.msra.mxu0 0.0
    %405 = vmatprep.subr.mxu0 0.0
    %406 = vmatpush1.xpose.msra.mxu0 0.0
    %407 = vmatprep.subr.mxu0 0.0
    %408 = vmatpush1.xpose.msra.mxu0 0.0
    %409 = vmatprep.subr.mxu0 0.0
    %410 = vmatpush1.xpose.msra.mxu0 0.0
    %411 = vmatprep.subr.mxu0 0.0
    %412 = vmatpush1.xpose.msra.mxu0 0.0
    %413 = vmatprep.subr.mxu0 0.0
    %414 = vmatpush1.xpose.msra.mxu0 0.0
    %415 = vmatprep.subr.mxu0 0.0
    %416 = vmatpush1.xpose.msra.mxu0 0.0
    %417 = vmatprep.subr.mxu0 0.0
    %418 = vmatpush1.xpose.msra.mxu0 0.0
    %419 = vmatprep.subr.mxu0 0.0
    %420 = vmatpush1.xpose.msra.mxu0 0.0
    %421 = vmatprep.mubr.f32.mxu0 0.0
    %422 = vmatmul.mubr.f32.gmra.mrb[0].mxu0 %v353
    %v423 = vpop.f32.mrb[0].mxu0
    %v424 = vadd.f32 0.0, %v423
    %v425 = vpop.f32.mrb[0].mxu0
    %426 = vdwg.mxu0
    %428 = vrot.lane.b32.xlu0 %v112, 96
    %v429 = vpop.permute.xlu0 %428
    %v430 = vsel %vm118, %v112, 0
    %v432 = vsel %vm118, %v429, 0
    %434 = vmatprep.subr.mxu0 0.0
    %435 = vmatpush1.xpose.msra.mxu0 %v432
    %436 = vmatprep.subr.mxu0 0.0
    %437 = vmatpush1.xpose.msra.mxu0 0.0
    %438 = vmatprep.subr.mxu0 0.0
    %439 = vmatpush1.xpose.msra.mxu0 0.0
    %440 = vmatprep.subr.mxu0 0.0
    %441 = vmatpush1.xpose.msra.mxu0 0.0
    %442 = vmatprep.subr.mxu0 0.0
    %443 = vmatpush1.xpose.msra.mxu0 0.0
    %444 = vmatprep.subr.mxu0 0.0
    %445 = vmatpush1.xpose.msra.mxu0 0.0
    %446 = vmatprep.subr.mxu0 0.0
    %447 = vmatpush1.xpose.msra.mxu0 0.0
    %448 = vmatprep.subr.mxu0 0.0
    %449 = vmatpush1.xpose.msra.mxu0 0.0
    %450 = vmatprep.subr.mxu0 0.0
    %451 = vmatpush1.xpose.msra.mxu0 0.0
    %452 = vmatprep.subr.mxu0 0.0
    %453 = vmatpush1.xpose.msra.mxu0 0.0
    %454 = vmatprep.subr.mxu0 0.0
    %455 = vmatpush1.xpose.msra.mxu0 0.0
    %456 = vmatprep.subr.mxu0 0.0
    %457 = vmatpush1.xpose.msra.mxu0 0.0
    %458 = vmatprep.subr.mxu0 0.0
    %459 = vmatpush1.xpose.msra.mxu0 0.0
    %460 = vmatprep.subr.mxu0 0.0
    %461 = vmatpush1.xpose.msra.mxu0 0.0
    %462 = vmatprep.subr.mxu0 0.0
    %463 = vmatpush1.xpose.msra.mxu0 0.0
    %464 = vmatprep.subr.mxu0 0.0
    %465 = vmatpush1.xpose.msra.mxu0 0.0
    %466 = vmatprep.subr.mxu0 0.0
    %467 = vmatpush1.xpose.msra.mxu0 0.0
    %468 = vmatprep.subr.mxu0 0.0
    %469 = vmatpush1.xpose.msra.mxu0 0.0
    %470 = vmatprep.subr.mxu0 0.0
    %471 = vmatpush1.xpose.msra.mxu0 0.0
    %472 = vmatprep.subr.mxu0 0.0
    %473 = vmatpush1.xpose.msra.mxu0 0.0
    %474 = vmatprep.subr.mxu0 0.0
    %475 = vmatpush1.xpose.msra.mxu0 0.0
    %476 = vmatprep.subr.mxu0 0.0
    %477 = vmatpush1.xpose.msra.mxu0 0.0
    %478 = vmatprep.subr.mxu0 0.0
    %479 = vmatpush1.xpose.msra.mxu0 0.0
    %480 = vmatprep.subr.mxu0 0.0
    %481 = vmatpush1.xpose.msra.mxu0 0.0
    %482 = vmatprep.subr.mxu0 0.0
    %483 = vmatpush1.xpose.msra.mxu0 0.0
    %484 = vmatprep.subr.mxu0 0.0
    %485 = vmatpush1.xpose.msra.mxu0 0.0
    %486 = vmatprep.subr.mxu0 0.0
    %487 = vmatpush1.xpose.msra.mxu0 0.0
    %488 = vmatprep.subr.mxu0 0.0
    %489 = vmatpush1.xpose.msra.mxu0 0.0
    %490 = vmatprep.subr.mxu0 0.0
    %491 = vmatpush1.xpose.msra.mxu0 0.0
    %492 = vmatprep.subr.mxu0 0.0
    %493 = vmatpush1.xpose.msra.mxu0 0.0
    %494 = vmatprep.subr.mxu0 0.0
    %495 = vmatpush1.xpose.msra.mxu0 0.0
    %496 = vmatprep.subr.mxu0 0.0
    %497 = vmatpush1.xpose.msra.mxu0 0.0
    %498 = vmatprep.mubr.f32.mxu0 0.0
    %499 = vmatmul.mubr.f32.gmra.mrb[0].mxu0 %v430
    %v500 = vpop.f32.mrb[0].mxu0
    %v501 = vadd.f32 0.0, %v500
    %v502 = vpop.f32.mrb[0].mxu0
    %503 = vdwg.mxu0
    %504 = vrot.lane.b32.xlu0 %v112, 120
    %v505 = vpop.permute.xlu0 %504
    %506 = vrot.lane.b32.xlu0 %v112, 88
    %v507 = vpop.permute.xlu0 %506
    %v508 = vsel %vm118, %v505, 0
    %v510 = vsel %vm118, %v507, 0
    %512 = vmatprep.subr.mxu0 0.0
    %513 = vmatpush1.xpose.msra.mxu0 %v510
    %514 = vmatprep.subr.mxu0 0.0
    %515 = vmatpush1.xpose.msra.mxu0 0.0
    %516 = vmatprep.subr.mxu0 0.0
    %517 = vmatpush1.xpose.msra.mxu0 0.0
    %518 = vmatprep.subr.mxu0 0.0
    %519 = vmatpush1.xpose.msra.mxu0 0.0
    %520 = vmatprep.subr.mxu0 0.0
    %521 = vmatpush1.xpose.msra.mxu0 0.0
    %522 = vmatprep.subr.mxu0 0.0
    %523 = vmatpush1.xpose.msra.mxu0 0.0
    %524 = vmatprep.subr.mxu0 0.0
    %525 = vmatpush1.xpose.msra.mxu0 0.0
    %526 = vmatprep.subr.mxu0 0.0
    %527 = vmatpush1.xpose.msra.mxu0 0.0
    %528 = vmatprep.subr.mxu0 0.0
    %529 = vmatpush1.xpose.msra.mxu0 0.0
    %530 = vmatprep.subr.mxu0 0.0
    %531 = vmatpush1.xpose.msra.mxu0 0.0
    %532 = vmatprep.subr.mxu0 0.0
    %533 = vmatpush1.xpose.msra.mxu0 0.0
    %534 = vmatprep.subr.mxu0 0.0
    %535 = vmatpush1.xpose.msra.mxu0 0.0
    %536 = vmatprep.subr.mxu0 0.0
    %537 = vmatpush1.xpose.msra.mxu0 0.0
    %538 = vmatprep.subr.mxu0 0.0
    %539 = vmatpush1.xpose.msra.mxu0 0.0
    %540 = vmatprep.subr.mxu0 0.0
    %541 = vmatpush1.xpose.msra.mxu0 0.0
    %542 = vmatprep.subr.mxu0 0.0
    %543 = vmatpush1.xpose.msra.mxu0 0.0
    %544 = vmatprep.subr.mxu0 0.0
    %545 = vmatpush1.xpose.msra.mxu0 0.0
    %546 = vmatprep.subr.mxu0 0.0
    %547 = vmatpush1.xpose.msra.mxu0 0.0
    %548 = vmatprep.subr.mxu0 0.0
    %549 = vmatpush1.xpose.msra.mxu0 0.0
    %550 = vmatprep.subr.mxu0 0.0
    %551 = vmatpush1.xpose.msra.mxu0 0.0
    %552 = vmatprep.subr.mxu0 0.0
    %553 = vmatpush1.xpose.msra.mxu0 0.0
    %554 = vmatprep.subr.mxu0 0.0
    %555 = vmatpush1.xpose.msra.mxu0 0.0
    %556 = vmatprep.subr.mxu0 0.0
    %557 = vmatpush1.xpose.msra.mxu0 0.0
    %558 = vmatprep.subr.mxu0 0.0
    %559 = vmatpush1.xpose.msra.mxu0 0.0
    %560 = vmatprep.subr.mxu0 0.0
    %561 = vmatpush1.xpose.msra.mxu0 0.0
    %562 = vmatprep.subr.mxu0 0.0
    %563 = vmatpush1.xpose.msra.mxu0 0.0
    %564 = vmatprep.subr.mxu0 0.0
    %565 = vmatpush1.xpose.msra.mxu0 0.0
    %566 = vmatprep.subr.mxu0 0.0
    %567 = vmatpush1.xpose.msra.mxu0 0.0
    %568 = vmatprep.subr.mxu0 0.0
    %569 = vmatpush1.xpose.msra.mxu0 0.0
    %570 = vmatprep.subr.mxu0 0.0
    %571 = vmatpush1.xpose.msra.mxu0 0.0
    %572 = vmatprep.subr.mxu0 0.0
    %573 = vmatpush1.xpose.msra.mxu0 0.0
    %574 = vmatprep.subr.mxu0 0.0
    %575 = vmatpush1.xpose.msra.mxu0 0.0
    %576 = vmatprep.mubr.f32.mxu0 0.0
    %577 = vmatmul.mubr.f32.gmra.mrb[0].mxu0 %v508
    %v578 = vpop.f32.mrb[0].mxu0
    %v579 = vadd.f32 0.0, %v578
    %v580 = vpop.f32.mrb[0].mxu0
    %581 = vdwg.mxu0
    %582 = vrot.lane.b32.xlu0 %v112, 112
    %v583 = vpop.permute.xlu0 %582
    %584 = vrot.lane.b32.xlu0 %v112, 80
    %v585 = vpop.permute.xlu0 %584
    %v586 = vsel %vm118, %v583, 0
    %v588 = vsel %vm118, %v585, 0
    %590 = vmatprep.subr.mxu0 0.0
    %591 = vmatpush1.xpose.msra.mxu0 %v588
    %592 = vmatprep.subr.mxu0 0.0
    %593 = vmatpush1.xpose.msra.mxu0 0.0
    %594 = vmatprep.subr.mxu0 0.0
    %595 = vmatpush1.xpose.msra.mxu0 0.0
    %596 = vmatprep.subr.mxu0 0.0
    %597 = vmatpush1.xpose.msra.mxu0 0.0
    %598 = vmatprep.subr.mxu0 0.0
    %599 = vmatpush1.xpose.msra.mxu0 0.0
    %600 = vmatprep.subr.mxu0 0.0
    %601 = vmatpush1.xpose.msra.mxu0 0.0
    %602 = vmatprep.subr.mxu0 0.0
    %603 = vmatpush1.xpose.msra.mxu0 0.0
    %604 = vmatprep.subr.mxu0 0.0
    %605 = vmatpush1.xpose.msra.mxu0 0.0
    %606 = vmatprep.subr.mxu0 0.0
    %607 = vmatpush1.xpose.msra.mxu0 0.0
    %608 = vmatprep.subr.mxu0 0.0
    %609 = vmatpush1.xpose.msra.mxu0 0.0
    %610 = vmatprep.subr.mxu0 0.0
    %611 = vmatpush1.xpose.msra.mxu0 0.0
    %612 = vmatprep.subr.mxu0 0.0
    %613 = vmatpush1.xpose.msra.mxu0 0.0
    %614 = vmatprep.subr.mxu0 0.0
    %615 = vmatpush1.xpose.msra.mxu0 0.0
    %616 = vmatprep.subr.mxu0 0.0
    %617 = vmatpush1.xpose.msra.mxu0 0.0
    %618 = vmatprep.subr.mxu0 0.0
    %619 = vmatpush1.xpose.msra.mxu0 0.0
    %620 = vmatprep.subr.mxu0 0.0
    %621 = vmatpush1.xpose.msra.mxu0 0.0
    %622 = vmatprep.subr.mxu0 0.0
    %623 = vmatpush1.xpose.msra.mxu0 0.0
    %624 = vmatprep.subr.mxu0 0.0
    %625 = vmatpush1.xpose.msra.mxu0 0.0
    %626 = vmatprep.subr.mxu0 0.0
    %627 = vmatpush1.xpose.msra.mxu0 0.0
    %628 = vmatprep.subr.mxu0 0.0
    %629 = vmatpush1.xpose.msra.mxu0 0.0
    %630 = vmatprep.subr.mxu0 0.0
    %631 = vmatpush1.xpose.msra.mxu0 0.0
    %632 = vmatprep.subr.mxu0 0.0
    %633 = vmatpush1.xpose.msra.mxu0 0.0
    %634 = vmatprep.subr.mxu0 0.0
    %635 = vmatpush1.xpose.msra.mxu0 0.0
    %636 = vmatprep.subr.mxu0 0.0
    %637 = vmatpush1.xpose.msra.mxu0 0.0
    %638 = vmatprep.subr.mxu0 0.0
    %639 = vmatpush1.xpose.msra.mxu0 0.0
    %640 = vmatprep.subr.mxu0 0.0
    %641 = vmatpush1.xpose.msra.mxu0 0.0
    %642 = vmatprep.subr.mxu0 0.0
    %643 = vmatpush1.xpose.msra.mxu0 0.0
    %644 = vmatprep.subr.mxu0 0.0
    %645 = vmatpush1.xpose.msra.mxu0 0.0
    %646 = vmatprep.subr.mxu0 0.0
    %647 = vmatpush1.xpose.msra.mxu0 0.0
    %648 = vmatprep.subr.mxu0 0.0
    %649 = vmatpush1.xpose.msra.mxu0 0.0
    %650 = vmatprep.subr.mxu0 0.0
    %651 = vmatpush1.xpose.msra.mxu0 0.0
    %652 = vmatprep.subr.mxu0 0.0
    %653 = vmatpush1.xpose.msra.mxu0 0.0
    %654 = vmatprep.mubr.f32.mxu0 0.0
    %655 = vmatmul.mubr.f32.gmra.mrb[0].mxu0 %v586
    %v656 = vpop.f32.mrb[0].mxu0
    %v657 = vadd.f32 0.0, %v656
    %v658 = vpop.f32.mrb[0].mxu0
    %659 = vdwg.mxu0
    %660 = vrot.lane.b32.xlu0 %v112, 104
    %v661 = vpop.permute.xlu0 %660
    %662 = vrot.lane.b32.xlu0 %v112, 72
    %v663 = vpop.permute.xlu0 %662
    %v664 = vsel %vm118, %v661, 0
    %v666 = vsel %vm118, %v663, 0
    %668 = vmatprep.subr.mxu0 0.0
    %669 = vmatpush1.xpose.msra.mxu0 %v666
    %670 = vmatprep.subr.mxu0 0.0
    %671 = vmatpush1.xpose.msra.mxu0 0.0
    %672 = vmatprep.subr.mxu0 0.0
    %673 = vmatpush1.xpose.msra.mxu0 0.0
    %674 = vmatprep.subr.mxu0 0.0
    %675 = vmatpush1.xpose.msra.mxu0 0.0
    %676 = vmatprep.subr.mxu0 0.0
    %677 = vmatpush1.xpose.msra.mxu0 0.0
    %678 = vmatprep.subr.mxu0 0.0
    %679 = vmatpush1.xpose.msra.mxu0 0.0
    %680 = vmatprep.subr.mxu0 0.0
    %681 = vmatpush1.xpose.msra.mxu0 0.0
    %682 = vmatprep.subr.mxu0 0.0
    %683 = vmatpush1.xpose.msra.mxu0 0.0
    %684 = vmatprep.subr.mxu0 0.0
    %685 = vmatpush1.xpose.msra.mxu0 0.0
    %686 = vmatprep.subr.mxu0 0.0
    %687 = vmatpush1.xpose.msra.mxu0 0.0
    %688 = vmatprep.subr.mxu0 0.0
    %689 = vmatpush1.xpose.msra.mxu0 0.0
    %690 = vmatprep.subr.mxu0 0.0
    %691 = vmatpush1.xpose.msra.mxu0 0.0
    %692 = vmatprep.subr.mxu0 0.0
    %693 = vmatpush1.xpose.msra.mxu0 0.0
    %694 = vmatprep.subr.mxu0 0.0
    %695 = vmatpush1.xpose.msra.mxu0 0.0
    %696 = vmatprep.subr.mxu0 0.0
    %697 = vmatpush1.xpose.msra.mxu0 0.0
    %698 = vmatprep.subr.mxu0 0.0
    %699 = vmatpush1.xpose.msra.mxu0 0.0
    %700 = vmatprep.subr.mxu0 0.0
    %701 = vmatpush1.xpose.msra.mxu0 0.0
    %702 = vmatprep.subr.mxu0 0.0
    %703 = vmatpush1.xpose.msra.mxu0 0.0
    %704 = vmatprep.subr.mxu0 0.0
    %705 = vmatpush1.xpose.msra.mxu0 0.0
    %706 = vmatprep.subr.mxu0 0.0
    %707 = vmatpush1.xpose.msra.mxu0 0.0
    %708 = vmatprep.subr.mxu0 0.0
    %709 = vmatpush1.xpose.msra.mxu0 0.0
    %710 = vmatprep.subr.mxu0 0.0
    %711 = vmatpush1.xpose.msra.mxu0 0.0
    %712 = vmatprep.subr.mxu0 0.0
    %713 = vmatpush1.xpose.msra.mxu0 0.0
    %714 = vmatprep.subr.mxu0 0.0
    %715 = vmatpush1.xpose.msra.mxu0 0.0
    %716 = vmatprep.subr.mxu0 0.0
    %717 = vmatpush1.xpose.msra.mxu0 0.0
    %718 = vmatprep.subr.mxu0 0.0
    %719 = vmatpush1.xpose.msra.mxu0 0.0
    %720 = vmatprep.subr.mxu0 0.0
    %721 = vmatpush1.xpose.msra.mxu0 0.0
    %722 = vmatprep.subr.mxu0 0.0
    %723 = vmatpush1.xpose.msra.mxu0 0.0
    %724 = vmatprep.subr.mxu0 0.0
    %725 = vmatpush1.xpose.msra.mxu0 0.0
    %726 = vmatprep.subr.mxu0 0.0
    %727 = vmatpush1.xpose.msra.mxu0 0.0
    %728 = vmatprep.subr.mxu0 0.0
    %729 = vmatpush1.xpose.msra.mxu0 0.0
    %730 = vmatprep.subr.mxu0 0.0
    %731 = vmatpush1.xpose.msra.mxu0 0.0
    %732 = vmatprep.mubr.f32.mxu0 0.0
    %733 = vmatmul.mubr.f32.gmra.mrb[0].mxu0 %v664
    %v734 = vpop.f32.mrb[0].mxu0
    %v735 = vadd.f32 0.0, %v734
    %v736 = vpop.f32.mrb[0].mxu0
    %737 = vdwg.mxu0
    %v738 = vsel %vm118, %v190, -inf
    %739 = vmax.xlane.f32.xlu0 %v738
    %v740 = vpop.xlane.xlu0 %739
    %v741 = vsel %vm118, %v268, -inf
    %742 = vmax.xlane.f32.xlu0 %v741
    %v743 = vpop.xlane.xlu0 %742
    %v744 = vsel %vm118, %v346, -inf
    %745 = vmax.xlane.f32.xlu0 %v744
    %v746 = vpop.xlane.xlu0 %745
    %v747 = vsel %vm118, %v424, -inf
    %748 = vmax.xlane.f32.xlu0 %v747
    %v749 = vpop.xlane.xlu0 %748
    %v750 = vsel %vm118, %v501, -inf
    %751 = vmax.xlane.f32.xlu0 %v750
    %v752 = vpop.xlane.xlu0 %751
    %v753 = vsel %vm118, %v579, -inf
    %754 = vmax.xlane.f32.xlu0 %v753
    %v755 = vpop.xlane.xlu0 %754
    %v756 = vsel %vm118, %v657, -inf
    %757 = vmax.xlane.f32.xlu0 %v756
    %v758 = vpop.xlane.xlu0 %757
    %v759 = vsel %vm118, %v735, -inf
    %760 = vmax.xlane.f32.xlu0 %v759
    %v761 = vpop.xlane.xlu0 %760
    %v762 = vsub.f32 %v190, %v740
    %v763 = vsub.f32 %v268, %v743
    %v764 = vsub.f32 %v346, %v746
    %v765 = vsub.f32 %v424, %v749
    %v766 = vsub.f32 %v501, %v752
    %v767 = vsub.f32 %v579, %v755
    %v768 = vsub.f32 %v657, %v758
    %v769 = vsub.f32 %v735, %v761
    %v770 = vmul.f32 %v762, 1.442695
    %v771 = vpow.pop %v770
    %v772 = vmul.f32 %v763, 1.442695
    %v773 = vpow.pop %v772
    %v774 = vmul.f32 %v764, 1.442695
    %v775 = vpow.pop %v774
    %v776 = vmul.f32 %v765, 1.442695
    %v777 = vpow.pop %v776
    %v778 = vmul.f32 %v766, 1.442695
    %v779 = vpow.pop %v778
    %v780 = vmul.f32 %v767, 1.442695
    %v781 = vpow.pop %v780
    %v782 = vmul.f32 %v768, 1.442695
    %v783 = vpow.pop %v782
    %v784 = vmul.f32 %v769, 1.442695
    %v785 = vpow.pop %v784
    %v786 = vsel %vm118, %v771, 0.0
    %787 = vadd.xlane.f32.xlu0 %v786
    %v788 = vpop.xlane.xlu0 %787
    %v789 = vsel %vm118, %v773, 0.0
    %790 = vadd.xlane.f32.xlu0 %v789
    %v791 = vpop.xlane.xlu0 %790
    %v792 = vsel %vm118, %v775, 0.0
    %793 = vadd.xlane.f32.xlu0 %v792
    %v794 = vpop.xlane.xlu0 %793
    %v795 = vsel %vm118, %v777, 0.0
    %796 = vadd.xlane.f32.xlu0 %v795
    %v797 = vpop.xlane.xlu0 %796
    %v798 = vsel %vm118, %v779, 0.0
    %799 = vadd.xlane.f32.xlu0 %v798
    %v800 = vpop.xlane.xlu0 %799
    %v801 = vsel %vm118, %v781, 0.0
    %802 = vadd.xlane.f32.xlu0 %v801
    %v803 = vpop.xlane.xlu0 %802
    %v804 = vsel %vm118, %v783, 0.0
    %805 = vadd.xlane.f32.xlu0 %v804
    %v806 = vpop.xlane.xlu0 %805
    %v807 = vsel %vm118, %v785, 0.0
    %808 = vadd.xlane.f32.xlu0 %v807
    %v809 = vpop.xlane.xlu0 %808
    %v810 = vrcp.pop %v788
    %v811 = vrcp.pop %v791
    %v812 = vrcp.pop %v794
    %v813 = vrcp.pop %v797
    %v814 = vrcp.pop %v800
    %v815 = vrcp.pop %v803
    %v816 = vrcp.pop %v806
    %v817 = vrcp.pop %v809
    %v818 = vmul.f32 %v771, %v810
    %v819 = vmul.f32 %v773, %v811
    %v820 = vmul.f32 %v775, %v812
    %v821 = vmul.f32 %v777, %v813
    %v822 = vmul.f32 %v779, %v814
    %v823 = vmul.f32 %v781, %v815
    %v824 = vmul.f32 %v783, %v816
    %v825 = vmul.f32 %v785, %v817
    %826 = vrot.lane.b32.xlu0 %v107, 64
    %v827 = vpop.permute.xlu0 %826
    %v830 = vsel %vm118, %v818, 0
    %832 = vmatprep.subr.mxu0 0.0
    %833 = vmatpush1.msra.mxu0 %v827
    %834 = vmatprep.subr.mxu0 0.0
    %835 = vmatpush1.msra.mxu0 0.0
    %836 = vmatprep.subr.mxu0 0.0
    %837 = vmatpush1.msra.mxu0 0.0
    %838 = vmatprep.subr.mxu0 0.0
    %839 = vmatpush1.msra.mxu0 0.0
    %840 = vmatprep.subr.mxu0 0.0
    %841 = vmatpush1.msra.mxu0 0.0
    %842 = vmatprep.subr.mxu0 0.0
    %843 = vmatpush1.msra.mxu0 0.0
    %844 = vmatprep.subr.mxu0 0.0
    %845 = vmatpush1.msra.mxu0 0.0
    %846 = vmatprep.subr.mxu0 0.0
    %847 = vmatpush1.msra.mxu0 0.0
    %848 = vmatprep.subr.mxu0 0.0
    %849 = vmatpush1.msra.mxu0 0.0
    %850 = vmatprep.subr.mxu0 0.0
    %851 = vmatpush1.msra.mxu0 0.0
    %852 = vmatprep.subr.mxu0 0.0
    %853 = vmatpush1.msra.mxu0 0.0
    %854 = vmatprep.subr.mxu0 0.0
    %855 = vmatpush1.msra.mxu0 0.0
    %856 = vmatprep.subr.mxu0 0.0
    %857 = vmatpush1.msra.mxu0 0.0
    %858 = vmatprep.subr.mxu0 0.0
    %859 = vmatpush1.msra.mxu0 0.0
    %860 = vmatprep.subr.mxu0 0.0
    %861 = vmatpush1.msra.mxu0 0.0
    %862 = vmatprep.subr.mxu0 0.0
    %863 = vmatpush1.msra.mxu0 0.0
    %864 = vmatprep.subr.mxu0 0.0
    %865 = vmatpush1.msra.mxu0 0.0
    %866 = vmatprep.subr.mxu0 0.0
    %867 = vmatpush1.msra.mxu0 0.0
    %868 = vmatprep.subr.mxu0 0.0
    %869 = vmatpush1.msra.mxu0 0.0
    %870 = vmatprep.subr.mxu0 0.0
    %871 = vmatpush1.msra.mxu0 0.0
    %872 = vmatprep.subr.mxu0 0.0
    %873 = vmatpush1.msra.mxu0 0.0
    %874 = vmatprep.subr.mxu0 0.0
    %875 = vmatpush1.msra.mxu0 0.0
    %876 = vmatprep.subr.mxu0 0.0
    %877 = vmatpush1.msra.mxu0 0.0
    %878 = vmatprep.subr.mxu0 0.0
    %879 = vmatpush1.msra.mxu0 0.0
    %880 = vmatprep.subr.mxu0 0.0
    %881 = vmatpush1.msra.mxu0 0.0
    %882 = vmatprep.subr.mxu0 0.0
    %883 = vmatpush1.msra.mxu0 0.0
    %884 = vmatprep.subr.mxu0 0.0
    %885 = vmatpush1.msra.mxu0 0.0
    %886 = vmatprep.subr.mxu0 0.0
    %887 = vmatpush1.msra.mxu0 0.0
    %888 = vmatprep.subr.mxu0 0.0
    %889 = vmatpush1.msra.mxu0 0.0
    %890 = vmatprep.subr.mxu0 0.0
    %891 = vmatpush1.msra.mxu0 0.0
    %892 = vmatprep.subr.mxu0 0.0
    %893 = vmatpush1.msra.mxu0 0.0
    %894 = vmatprep.subr.mxu0 0.0
    %895 = vmatpush1.msra.mxu0 0.0
    %896 = vmatprep.mubr.f32.mxu0 0.0
    %897 = vmatmul.mubr.f32.gmra.mrb[0].mxu0 %v830
    %v898 = vpop.f32.mrb[0].mxu0
    %v899 = vadd.f32 0.0, %v898
    %v900 = vpop.f32.mrb[0].mxu0
    %901 = vdwg.mxu0
    %902 = vrot.lane.b32.xlu0 %v107, 56
    %v903 = vpop.permute.xlu0 %902
    %v906 = vsel %vm118, %v819, 0
    %908 = vmatprep.subr.mxu0 0.0
    %909 = vmatpush1.msra.mxu0 %v903
    %910 = vmatprep.subr.mxu0 0.0
    %911 = vmatpush1.msra.mxu0 0.0
    %912 = vmatprep.subr.mxu0 0.0
    %913 = vmatpush1.msra.mxu0 0.0
    %914 = vmatprep.subr.mxu0 0.0
    %915 = vmatpush1.msra.mxu0 0.0
    %916 = vmatprep.subr.mxu0 0.0
    %917 = vmatpush1.msra.mxu0 0.0
    %918 = vmatprep.subr.mxu0 0.0
    %919 = vmatpush1.msra.mxu0 0.0
    %920 = vmatprep.subr.mxu0 0.0
    %921 = vmatpush1.msra.mxu0 0.0
    %922 = vmatprep.subr.mxu0 0.0
    %923 = vmatpush1.msra.mxu0 0.0
    %924 = vmatprep.subr.mxu0 0.0
    %925 = vmatpush1.msra.mxu0 0.0
    %926 = vmatprep.subr.mxu0 0.0
    %927 = vmatpush1.msra.mxu0 0.0
    %928 = vmatprep.subr.mxu0 0.0
    %929 = vmatpush1.msra.mxu0 0.0
    %930 = vmatprep.subr.mxu0 0.0
    %931 = vmatpush1.msra.mxu0 0.0
    %932 = vmatprep.subr.mxu0 0.0
    %933 = vmatpush1.msra.mxu0 0.0
    %934 = vmatprep.subr.mxu0 0.0
    %935 = vmatpush1.msra.mxu0 0.0
    %936 = vmatprep.subr.mxu0 0.0
    %937 = vmatpush1.msra.mxu0 0.0
    %938 = vmatprep.subr.mxu0 0.0
    %939 = vmatpush1.msra.mxu0 0.0
    %940 = vmatprep.subr.mxu0 0.0
    %941 = vmatpush1.msra.mxu0 0.0
    %942 = vmatprep.subr.mxu0 0.0
    %943 = vmatpush1.msra.mxu0 0.0
    %944 = vmatprep.subr.mxu0 0.0
    %945 = vmatpush1.msra.mxu0 0.0
    %946 = vmatprep.subr.mxu0 0.0
    %947 = vmatpush1.msra.mxu0 0.0
    %948 = vmatprep.subr.mxu0 0.0
    %949 = vmatpush1.msra.mxu0 0.0
    %950 = vmatprep.subr.mxu0 0.0
    %951 = vmatpush1.msra.mxu0 0.0
    %952 = vmatprep.subr.mxu0 0.0
    %953 = vmatpush1.msra.mxu0 0.0
    %954 = vmatprep.subr.mxu0 0.0
    %955 = vmatpush1.msra.mxu0 0.0
    %956 = vmatprep.subr.mxu0 0.0
    %957 = vmatpush1.msra.mxu0 0.0
    %958 = vmatprep.subr.mxu0 0.0
    %959 = vmatpush1.msra.mxu0 0.0
    %960 = vmatprep.subr.mxu0 0.0
    %961 = vmatpush1.msra.mxu0 0.0
    %962 = vmatprep.subr.mxu0 0.0
    %963 = vmatpush1.msra.mxu0 0.0
    %964 = vmatprep.subr.mxu0 0.0
    %965 = vmatpush1.msra.mxu0 0.0
    %966 = vmatprep.subr.mxu0 0.0
    %967 = vmatpush1.msra.mxu0 0.0
    %968 = vmatprep.subr.mxu0 0.0
    %969 = vmatpush1.msra.mxu0 0.0
    %970 = vmatprep.subr.mxu0 0.0
    %971 = vmatpush1.msra.mxu0 0.0
    %972 = vmatprep.mubr.f32.mxu0 0.0
    %973 = vmatmul.mubr.f32.gmra.mrb[0].mxu0 %v906
    %v974 = vpop.f32.mrb[0].mxu0
    %v975 = vadd.f32 0.0, %v974
    %v976 = vpop.f32.mrb[0].mxu0
    %977 = vdwg.mxu0
    %978 = vrot.lane.b32.xlu0 %v107, 48
    %v979 = vpop.permute.xlu0 %978
    %v982 = vsel %vm118, %v820, 0
    %984 = vmatprep.subr.mxu0 0.0
    %985 = vmatpush1.msra.mxu0 %v979
    %986 = vmatprep.subr.mxu0 0.0
    %987 = vmatpush1.msra.mxu0 0.0
    %988 = vmatprep.subr.mxu0 0.0
    %989 = vmatpush1.msra.mxu0 0.0
    %990 = vmatprep.subr.mxu0 0.0
    %991 = vmatpush1.msra.mxu0 0.0
    %992 = vmatprep.subr.mxu0 0.0
    %993 = vmatpush1.msra.mxu0 0.0
    %994 = vmatprep.subr.mxu0 0.0
    %995 = vmatpush1.msra.mxu0 0.0
    %996 = vmatprep.subr.mxu0 0.0
    %997 = vmatpush1.msra.mxu0 0.0
    %998 = vmatprep.subr.mxu0 0.0
    %999 = vmatpush1.msra.mxu0 0.0
    %1000 = vmatprep.subr.mxu0 0.0
    %1001 = vmatpush1.msra.mxu0 0.0
    %1002 = vmatprep.subr.mxu0 0.0
    %1003 = vmatpush1.msra.mxu0 0.0
    %1004 = vmatprep.subr.mxu0 0.0
    %1005 = vmatpush1.msra.mxu0 0.0
    %1006 = vmatprep.subr.mxu0 0.0
    %1007 = vmatpush1.msra.mxu0 0.0
    %1008 = vmatprep.subr.mxu0 0.0
    %1009 = vmatpush1.msra.mxu0 0.0
    %1010 = vmatprep.subr.mxu0 0.0
    %1011 = vmatpush1.msra.mxu0 0.0
    %1012 = vmatprep.subr.mxu0 0.0
    %1013 = vmatpush1.msra.mxu0 0.0
    %1014 = vmatprep.subr.mxu0 0.0
    %1015 = vmatpush1.msra.mxu0 0.0
    %1016 = vmatprep.subr.mxu0 0.0
    %1017 = vmatpush1.msra.mxu0 0.0
    %1018 = vmatprep.subr.mxu0 0.0
    %1019 = vmatpush1.msra.mxu0 0.0
    %1020 = vmatprep.subr.mxu0 0.0
    %1021 = vmatpush1.msra.mxu0 0.0
    %1022 = vmatprep.subr.mxu0 0.0
    %1023 = vmatpush1.msra.mxu0 0.0
    %1024 = vmatprep.subr.mxu0 0.0
    %1025 = vmatpush1.msra.mxu0 0.0
    %1026 = vmatprep.subr.mxu0 0.0
    %1027 = vmatpush1.msra.mxu0 0.0
    %1028 = vmatprep.subr.mxu0 0.0
    %1029 = vmatpush1.msra.mxu0 0.0
    %1030 = vmatprep.subr.mxu0 0.0
    %1031 = vmatpush1.msra.mxu0 0.0
    %1032 = vmatprep.subr.mxu0 0.0
    %1033 = vmatpush1.msra.mxu0 0.0
    %1034 = vmatprep.subr.mxu0 0.0
    %1035 = vmatpush1.msra.mxu0 0.0
    %1036 = vmatprep.subr.mxu0 0.0
    %1037 = vmatpush1.msra.mxu0 0.0
    %1038 = vmatprep.subr.mxu0 0.0
    %1039 = vmatpush1.msra.mxu0 0.0
    %1040 = vmatprep.subr.mxu0 0.0
    %1041 = vmatpush1.msra.mxu0 0.0
    %1042 = vmatprep.subr.mxu0 0.0
    %1043 = vmatpush1.msra.mxu0 0.0
    %1044 = vmatprep.subr.mxu0 0.0
    %1045 = vmatpush1.msra.mxu0 0.0
    %1046 = vmatprep.subr.mxu0 0.0
    %1047 = vmatpush1.msra.mxu0 0.0
    %1048 = vmatprep.mubr.f32.mxu0 0.0
    %1049 = vmatmul.mubr.f32.gmra.mrb[0].mxu0 %v982
    %v1050 = vpop.f32.mrb[0].mxu0
    %v1051 = vadd.f32 0.0, %v1050
    %v1052 = vpop.f32.mrb[0].mxu0
    %1053 = vdwg.mxu0
    %1054 = vrot.lane.b32.xlu0 %v107, 40
    %v1055 = vpop.permute.xlu0 %1054
    %v1058 = vsel %vm118, %v821, 0
    %1060 = vmatprep.subr.mxu0 0.0
    %1061 = vmatpush1.msra.mxu0 %v1055
    %1062 = vmatprep.subr.mxu0 0.0
    %1063 = vmatpush1.msra.mxu0 0.0
    %1064 = vmatprep.subr.mxu0 0.0
    %1065 = vmatpush1.msra.mxu0 0.0
    %1066 = vmatprep.subr.mxu0 0.0
    %1067 = vmatpush1.msra.mxu0 0.0
    %1068 = vmatprep.subr.mxu0 0.0
    %1069 = vmatpush1.msra.mxu0 0.0
    %1070 = vmatprep.subr.mxu0 0.0
    %1071 = vmatpush1.msra.mxu0 0.0
    %1072 = vmatprep.subr.mxu0 0.0
    %1073 = vmatpush1.msra.mxu0 0.0
    %1074 = vmatprep.subr.mxu0 0.0
    %1075 = vmatpush1.msra.mxu0 0.0
    %1076 = vmatprep.subr.mxu0 0.0
    %1077 = vmatpush1.msra.mxu0 0.0
    %1078 = vmatprep.subr.mxu0 0.0
    %1079 = vmatpush1.msra.mxu0 0.0
    %1080 = vmatprep.subr.mxu0 0.0
    %1081 = vmatpush1.msra.mxu0 0.0
    %1082 = vmatprep.subr.mxu0 0.0
    %1083 = vmatpush1.msra.mxu0 0.0
    %1084 = vmatprep.subr.mxu0 0.0
    %1085 = vmatpush1.msra.mxu0 0.0
    %1086 = vmatprep.subr.mxu0 0.0
    %1087 = vmatpush1.msra.mxu0 0.0
    %1088 = vmatprep.subr.mxu0 0.0
    %1089 = vmatpush1.msra.mxu0 0.0
    %1090 = vmatprep.subr.mxu0 0.0
    %1091 = vmatpush1.msra.mxu0 0.0
    %1092 = vmatprep.subr.mxu0 0.0
    %1093 = vmatpush1.msra.mxu0 0.0
    %1094 = vmatprep.subr.mxu0 0.0
    %1095 = vmatpush1.msra.mxu0 0.0
    %1096 = vmatprep.subr.mxu0 0.0
    %1097 = vmatpush1.msra.mxu0 0.0
    %1098 = vmatprep.subr.mxu0 0.0
    %1099 = vmatpush1.msra.mxu0 0.0
    %1100 = vmatprep.subr.mxu0 0.0
    %1101 = vmatpush1.msra.mxu0 0.0
    %1102 = vmatprep.subr.mxu0 0.0
    %1103 = vmatpush1.msra.mxu0 0.0
    %1104 = vmatprep.subr.mxu0 0.0
    %1105 = vmatpush1.msra.mxu0 0.0
    %1106 = vmatprep.subr.mxu0 0.0
    %1107 = vmatpush1.msra.mxu0 0.0
    %1108 = vmatprep.subr.mxu0 0.0
    %1109 = vmatpush1.msra.mxu0 0.0
    %1110 = vmatprep.subr.mxu0 0.0
    %1111 = vmatpush1.msra.mxu0 0.0
    %1112 = vmatprep.subr.mxu0 0.0
    %1113 = vmatpush1.msra.mxu0 0.0
    %1114 = vmatprep.subr.mxu0 0.0
    %1115 = vmatpush1.msra.mxu0 0.0
    %1116 = vmatprep.subr.mxu0 0.0
    %1117 = vmatpush1.msra.mxu0 0.0
    %1118 = vmatprep.subr.mxu0 0.0
    %1119 = vmatpush1.msra.mxu0 0.0
    %1120 = vmatprep.subr.mxu0 0.0
    %1121 = vmatpush1.msra.mxu0 0.0
    %1122 = vmatprep.subr.mxu0 0.0
    %1123 = vmatpush1.msra.mxu0 0.0
    %1124 = vmatprep.mubr.f32.mxu0 0.0
    %1125 = vmatmul.mubr.f32.gmra.mrb[0].mxu0 %v1058
    %v1126 = vpop.f32.mrb[0].mxu0
    %v1127 = vadd.f32 0.0, %v1126
    %v1128 = vpop.f32.mrb[0].mxu0
    %1129 = vdwg.mxu0
    %1131 = vrot.lane.b32.xlu0 %v975, 8
    %v1132 = vpop.permute.xlu0 %1131
    %1135 = vrot.lane.b32.xlu0 %v1051, 16
    %v1136 = vpop.permute.xlu0 %1135
    %1139 = vrot.lane.b32.xlu0 %v1127, 24
    %v1140 = vpop.permute.xlu0 %1139
    %v1142 = vsel %vm118, %v899, %v1132
    %vm1143 = vcmask 130048
    %v1144 = vsel %vm1143, %v1142, %v1136
    %vm1145 = vcmask 195584
    %v1146 = vsel %vm1145, %v1144, %v1140
    %1147 = vrot.lane.b32.xlu0 %v112, 64
    %v1148 = vpop.permute.xlu0 %1147
    %v1151 = vsel %vm118, %v822, 0
    %1153 = vmatprep.subr.mxu0 0.0
    %1154 = vmatpush1.msra.mxu0 %v1148
    %1155 = vmatprep.subr.mxu0 0.0
    %1156 = vmatpush1.msra.mxu0 0.0
    %1157 = vmatprep.subr.mxu0 0.0
    %1158 = vmatpush1.msra.mxu0 0.0
    %1159 = vmatprep.subr.mxu0 0.0
    %1160 = vmatpush1.msra.mxu0 0.0
    %1161 = vmatprep.subr.mxu0 0.0
    %1162 = vmatpush1.msra.mxu0 0.0
    %1163 = vmatprep.subr.mxu0 0.0
    %1164 = vmatpush1.msra.mxu0 0.0
    %1165 = vmatprep.subr.mxu0 0.0
    %1166 = vmatpush1.msra.mxu0 0.0
    %1167 = vmatprep.subr.mxu0 0.0
    %1168 = vmatpush1.msra.mxu0 0.0
    %1169 = vmatprep.subr.mxu0 0.0
    %1170 = vmatpush1.msra.mxu0 0.0
    %1171 = vmatprep.subr.mxu0 0.0
    %1172 = vmatpush1.msra.mxu0 0.0
    %1173 = vmatprep.subr.mxu0 0.0
    %1174 = vmatpush1.msra.mxu0 0.0
    %1175 = vmatprep.subr.mxu0 0.0
    %1176 = vmatpush1.msra.mxu0 0.0
    %1177 = vmatprep.subr.mxu0 0.0
    %1178 = vmatpush1.msra.mxu0 0.0
    %1179 = vmatprep.subr.mxu0 0.0
    %1180 = vmatpush1.msra.mxu0 0.0
    %1181 = vmatprep.subr.mxu0 0.0
    %1182 = vmatpush1.msra.mxu0 0.0
    %1183 = vmatprep.subr.mxu0 0.0
    %1184 = vmatpush1.msra.mxu0 0.0
    %1185 = vmatprep.subr.mxu0 0.0
    %1186 = vmatpush1.msra.mxu0 0.0
    %1187 = vmatprep.subr.mxu0 0.0
    %1188 = vmatpush1.msra.mxu0 0.0
    %1189 = vmatprep.subr.mxu0 0.0
    %1190 = vmatpush1.msra.mxu0 0.0
    %1191 = vmatprep.subr.mxu0 0.0
    %1192 = vmatpush1.msra.mxu0 0.0
    %1193 = vmatprep.subr.mxu0 0.0
    %1194 = vmatpush1.msra.mxu0 0.0
    %1195 = vmatprep.subr.mxu0 0.0
    %1196 = vmatpush1.msra.mxu0 0.0
    %1197 = vmatprep.subr.mxu0 0.0
    %1198 = vmatpush1.msra.mxu0 0.0
    %1199 = vmatprep.subr.mxu0 0.0
    %1200 = vmatpush1.msra.mxu0 0.0
    %1201 = vmatprep.subr.mxu0 0.0
    %1202 = vmatpush1.msra.mxu0 0.0
    %1203 = vmatprep.subr.mxu0 0.0
    %1204 = vmatpush1.msra.mxu0 0.0
    %1205 = vmatprep.subr.mxu0 0.0
    %1206 = vmatpush1.msra.mxu0 0.0
    %1207 = vmatprep.subr.mxu0 0.0
    %1208 = vmatpush1.msra.mxu0 0.0
    %1209 = vmatprep.subr.mxu0 0.0
    %1210 = vmatpush1.msra.mxu0 0.0
    %1211 = vmatprep.subr.mxu0 0.0
    %1212 = vmatpush1.msra.mxu0 0.0
    %1213 = vmatprep.subr.mxu0 0.0
    %1214 = vmatpush1.msra.mxu0 0.0
    %1215 = vmatprep.subr.mxu0 0.0
    %1216 = vmatpush1.msra.mxu0 0.0
    %1217 = vmatprep.mubr.f32.mxu0 0.0
    %1218 = vmatmul.mubr.f32.gmra.mrb[0].mxu0 %v1151
    %v1219 = vpop.f32.mrb[0].mxu0
    %v1220 = vadd.f32 0.0, %v1219
    %v1221 = vpop.f32.mrb[0].mxu0
    %1222 = vdwg.mxu0
    %1223 = vrot.lane.b32.xlu0 %v112, 56
    %v1224 = vpop.permute.xlu0 %1223
    %v1227 = vsel %vm118, %v823, 0
    %1229 = vmatprep.subr.mxu0 0.0
    %1230 = vmatpush1.msra.mxu0 %v1224
    %1231 = vmatprep.subr.mxu0 0.0
    %1232 = vmatpush1.msra.mxu0 0.0
    %1233 = vmatprep.subr.mxu0 0.0
    %1234 = vmatpush1.msra.mxu0 0.0
    %1235 = vmatprep.subr.mxu0 0.0
    %1236 = vmatpush1.msra.mxu0 0.0
    %1237 = vmatprep.subr.mxu0 0.0
    %1238 = vmatpush1.msra.mxu0 0.0
    %1239 = vmatprep.subr.mxu0 0.0
    %1240 = vmatpush1.msra.mxu0 0.0
    %1241 = vmatprep.subr.mxu0 0.0
    %1242 = vmatpush1.msra.mxu0 0.0
    %1243 = vmatprep.subr.mxu0 0.0
    %1244 = vmatpush1.msra.mxu0 0.0
    %1245 = vmatprep.subr.mxu0 0.0
    %1246 = vmatpush1.msra.mxu0 0.0
    %1247 = vmatprep.subr.mxu0 0.0
    %1248 = vmatpush1.msra.mxu0 0.0
    %1249 = vmatprep.subr.mxu0 0.0
    %1250 = vmatpush1.msra.mxu0 0.0
    %1251 = vmatprep.subr.mxu0 0.0
    %1252 = vmatpush1.msra.mxu0 0.0
    %1253 = vmatprep.subr.mxu0 0.0
    %1254 = vmatpush1.msra.mxu0 0.0
    %1255 = vmatprep.subr.mxu0 0.0
    %1256 = vmatpush1.msra.mxu0 0.0
    %1257 = vmatprep.subr.mxu0 0.0
    %1258 = vmatpush1.msra.mxu0 0.0
    %1259 = vmatprep.subr.mxu0 0.0
    %1260 = vmatpush1.msra.mxu0 0.0
    %1261 = vmatprep.subr.mxu0 0.0
    %1262 = vmatpush1.msra.mxu0 0.0
    %1263 = vmatprep.subr.mxu0 0.0
    %1264 = vmatpush1.msra.mxu0 0.0
    %1265 = vmatprep.subr.mxu0 0.0
    %1266 = vmatpush1.msra.mxu0 0.0
    %1267 = vmatprep.subr.mxu0 0.0
    %1268 = vmatpush1.msra.mxu0 0.0
    %1269 = vmatprep.subr.mxu0 0.0
    %1270 = vmatpush1.msra.mxu0 0.0
    %1271 = vmatprep.subr.mxu0 0.0
    %1272 = vmatpush1.msra.mxu0 0.0
    %1273 = vmatprep.subr.mxu0 0.0
    %1274 = vmatpush1.msra.mxu0 0.0
    %1275 = vmatprep.subr.mxu0 0.0
    %1276 = vmatpush1.msra.mxu0 0.0
    %1277 = vmatprep.subr.mxu0 0.0
    %1278 = vmatpush1.msra.mxu0 0.0
    %1279 = vmatprep.subr.mxu0 0.0
    %1280 = vmatpush1.msra.mxu0 0.0
    %1281 = vmatprep.subr.mxu0 0.0
    %1282 = vmatpush1.msra.mxu0 0.0
    %1283 = vmatprep.subr.mxu0 0.0
    %1284 = vmatpush1.msra.mxu0 0.0
    %1285 = vmatprep.subr.mxu0 0.0
    %1286 = vmatpush1.msra.mxu0 0.0
    %1287 = vmatprep.subr.mxu0 0.0
    %1288 = vmatpush1.msra.mxu0 0.0
    %1289 = vmatprep.subr.mxu0 0.0
    %1290 = vmatpush1.msra.mxu0 0.0
    %1291 = vmatprep.subr.mxu0 0.0
    %1292 = vmatpush1.msra.mxu0 0.0
    %1293 = vmatprep.mubr.f32.mxu0 0.0
    %1294 = vmatmul.mubr.f32.gmra.mrb[0].mxu0 %v1227
    %v1295 = vpop.f32.mrb[0].mxu0
    %v1296 = vadd.f32 0.0, %v1295
    %v1297 = vpop.f32.mrb[0].mxu0
    %1298 = vdwg.mxu0
    %1299 = vrot.lane.b32.xlu0 %v112, 48
    %v1300 = vpop.permute.xlu0 %1299
    %v1303 = vsel %vm118, %v824, 0
    %1305 = vmatprep.subr.mxu0 0.0
    %1306 = vmatpush1.msra.mxu0 %v1300
    %1307 = vmatprep.subr.mxu0 0.0
    %1308 = vmatpush1.msra.mxu0 0.0
    %1309 = vmatprep.subr.mxu0 0.0
    %1310 = vmatpush1.msra.mxu0 0.0
    %1311 = vmatprep.subr.mxu0 0.0
    %1312 = vmatpush1.msra.mxu0 0.0
    %1313 = vmatprep.subr.mxu0 0.0
    %1314 = vmatpush1.msra.mxu0 0.0
    %1315 = vmatprep.subr.mxu0 0.0
    %1316 = vmatpush1.msra.mxu0 0.0
    %1317 = vmatprep.subr.mxu0 0.0
    %1318 = vmatpush1.msra.mxu0 0.0
    %1319 = vmatprep.subr.mxu0 0.0
    %1320 = vmatpush1.msra.mxu0 0.0
    %1321 = vmatprep.subr.mxu0 0.0
    %1322 = vmatpush1.msra.mxu0 0.0
    %1323 = vmatprep.subr.mxu0 0.0
    %1324 = vmatpush1.msra.mxu0 0.0
    %1325 = vmatprep.subr.mxu0 0.0
    %1326 = vmatpush1.msra.mxu0 0.0
    %1327 = vmatprep.subr.mxu0 0.0
    %1328 = vmatpush1.msra.mxu0 0.0
    %1329 = vmatprep.subr.mxu0 0.0
    %1330 = vmatpush1.msra.mxu0 0.0
    %1331 = vmatprep.subr.mxu0 0.0
    %1332 = vmatpush1.msra.mxu0 0.0
    %1333 = vmatprep.subr.mxu0 0.0
    %1334 = vmatpush1.msra.mxu0 0.0
    %1335 = vmatprep.subr.mxu0 0.0
    %1336 = vmatpush1.msra.mxu0 0.0
    %1337 = vmatprep.subr.mxu0 0.0
    %1338 = vmatpush1.msra.mxu0 0.0
    %1339 = vmatprep.subr.mxu0 0.0
    %1340 = vmatpush1.msra.mxu0 0.0
    %1341 = vmatprep.subr.mxu0 0.0
    %1342 = vmatpush1.msra.mxu0 0.0
    %1343 = vmatprep.subr.mxu0 0.0
    %1344 = vmatpush1.msra.mxu0 0.0
    %1345 = vmatprep.subr.mxu0 0.0
    %1346 = vmatpush1.msra.mxu0 0.0
    %1347 = vmatprep.subr.mxu0 0.0
    %1348 = vmatpush1.msra.mxu0 0.0
    %1349 = vmatprep.subr.mxu0 0.0
    %1350 = vmatpush1.msra.mxu0 0.0
    %1351 = vmatprep.subr.mxu0 0.0
    %1352 = vmatpush1.msra.mxu0 0.0
    %1353 = vmatprep.subr.mxu0 0.0
    %1354 = vmatpush1.msra.mxu0 0.0
    %1355 = vmatprep.subr.mxu0 0.0
    %1356 = vmatpush1.msra.mxu0 0.0
    %1357 = vmatprep.subr.mxu0 0.0
    %1358 = vmatpush1.msra.mxu0 0.0
    %1359 = vmatprep.subr.mxu0 0.0
    %1360 = vmatpush1.msra.mxu0 0.0
    %1361 = vmatprep.subr.mxu0 0.0
    %1362 = vmatpush1.msra.mxu0 0.0
    %1363 = vmatprep.subr.mxu0 0.0
    %1364 = vmatpush1.msra.mxu0 0.0
    %1365 = vmatprep.subr.mxu0 0.0
    %1366 = vmatpush1.msra.mxu0 0.0
    %1367 = vmatprep.subr.mxu0 0.0
    %1368 = vmatpush1.msra.mxu0 0.0
    %1369 = vmatprep.mubr.f32.mxu0 0.0
    %1370 = vmatmul.mubr.f32.gmra.mrb[0].mxu0 %v1303
    %v1371 = vpop.f32.mrb[0].mxu0
    %v1372 = vadd.f32 0.0, %v1371
    %v1373 = vpop.f32.mrb[0].mxu0
    %1374 = vdwg.mxu0
    %1375 = vrot.lane.b32.xlu0 %v112, 40
    %v1376 = vpop.permute.xlu0 %1375
    %v1379 = vsel %vm118, %v825, 0
    %1381 = vmatprep.subr.mxu0 0.0
    %1382 = vmatpush1.msra.mxu0 %v1376
    %1383 = vmatprep.subr.mxu0 0.0
    %1384 = vmatpush1.msra.mxu0 0.0
    %1385 = vmatprep.subr.mxu0 0.0
    %1386 = vmatpush1.msra.mxu0 0.0
    %1387 = vmatprep.subr.mxu0 0.0
    %1388 = vmatpush1.msra.mxu0 0.0
    %1389 = vmatprep.subr.mxu0 0.0
    %1390 = vmatpush1.msra.mxu0 0.0
    %1391 = vmatprep.subr.mxu0 0.0
    %1392 = vmatpush1.msra.mxu0 0.0
    %1393 = vmatprep.subr.mxu0 0.0
    %1394 = vmatpush1.msra.mxu0 0.0
    %1395 = vmatprep.subr.mxu0 0.0
    %1396 = vmatpush1.msra.mxu0 0.0
    %1397 = vmatprep.subr.mxu0 0.0
    %1398 = vmatpush1.msra.mxu0 0.0
    %1399 = vmatprep.subr.mxu0 0.0
    %1400 = vmatpush1.msra.mxu0 0.0
    %1401 = vmatprep.subr.mxu0 0.0
    %1402 = vmatpush1.msra.mxu0 0.0
    %1403 = vmatprep.subr.mxu0 0.0
    %1404 = vmatpush1.msra.mxu0 0.0
    %1405 = vmatprep.subr.mxu0 0.0
    %1406 = vmatpush1.msra.mxu0 0.0
    %1407 = vmatprep.subr.mxu0 0.0
    %1408 = vmatpush1.msra.mxu0 0.0
    %1409 = vmatprep.subr.mxu0 0.0
    %1410 = vmatpush1.msra.mxu0 0.0
    %1411 = vmatprep.subr.mxu0 0.0
    %1412 = vmatpush1.msra.mxu0 0.0
    %1413 = vmatprep.subr.mxu0 0.0
    %1414 = vmatpush1.msra.mxu0 0.0
    %1415 = vmatprep.subr.mxu0 0.0
    %1416 = vmatpush1.msra.mxu0 0.0
    %1417 = vmatprep.subr.mxu0 0.0
    %1418 = vmatpush1.msra.mxu0 0.0
    %1419 = vmatprep.subr.mxu0 0.0
    %1420 = vmatpush1.msra.mxu0 0.0
    %1421 = vmatprep.subr.mxu0 0.0
    %1422 = vmatpush1.msra.mxu0 0.0
    %1423 = vmatprep.subr.mxu0 0.0
    %1424 = vmatpush1.msra.mxu0 0.0
    %1425 = vmatprep.subr.mxu0 0.0
    %1426 = vmatpush1.msra.mxu0 0.0
    %1427 = vmatprep.subr.mxu0 0.0
    %1428 = vmatpush1.msra.mxu0 0.0
    %1429 = vmatprep.subr.mxu0 0.0
    %1430 = vmatpush1.msra.mxu0 0.0
    %1431 = vmatprep.subr.mxu0 0.0
    %1432 = vmatpush1.msra.mxu0 0.0
    %1433 = vmatprep.subr.mxu0 0.0
    %1434 = vmatpush1.msra.mxu0 0.0
    %1435 = vmatprep.subr.mxu0 0.0
    %1436 = vmatpush1.msra.mxu0 0.0
    %1437 = vmatprep.subr.mxu0 0.0
    %1438 = vmatpush1.msra.mxu0 0.0
    %1439 = vmatprep.subr.mxu0 0.0
    %1440 = vmatpush1.msra.mxu0 0.0
    %1441 = vmatprep.subr.mxu0 0.0
    %1442 = vmatpush1.msra.mxu0 0.0
    %1443 = vmatprep.subr.mxu0 0.0
    %1444 = vmatpush1.msra.mxu0 0.0
    %1445 = vmatprep.mubr.f32.mxu0 0.0
    %1446 = vmatmul.mubr.f32.gmra.mrb[0].mxu0 %v1379
    %v1447 = vpop.f32.mrb[0].mxu0
    %v1448 = vadd.f32 0.0, %v1447
    %v1449 = vpop.f32.mrb[0].mxu0
    %1450 = vdwg.mxu0
    %1452 = vrot.lane.b32.xlu0 %v1296, 8
    %v1453 = vpop.permute.xlu0 %1452
    %1456 = vrot.lane.b32.xlu0 %v1372, 16
    %v1457 = vpop.permute.xlu0 %1456
    %1460 = vrot.lane.b32.xlu0 %v1448, 24
    %v1461 = vpop.permute.xlu0 %1460
    %v1463 = vsel %vm118, %v1220, %v1453
    %v1464 = vsel %vm1143, %v1463, %v1457
    %v1465 = vsel %vm1145, %v1464, %v1461
    %v1466 = vlaneseq
    %v1467 = vshrl.u32 %v1466, 7
    %v1468 = vsub.s32 2, %v1467
    %v1469 = vrot.slane %v26, %v1468
    %1474 = vrot.lane.b32.xlu0 %v18, 32
    %v1475 = vpop.permute.xlu0 %1474
    %1476 = vrot.lane.b32.xlu0 %v20, 32
    %v1477 = vpop.permute.xlu0 %1476
    %1478 = vrot.lane.b32.xlu0 %v22, 32
    %v1479 = vpop.permute.xlu0 %1478
    %1480 = vrot.lane.b32.xlu0 %v24, 32
    %v1481 = vpop.permute.xlu0 %1480
    %v1487 = vsel %vm33, %v1146, 0
    %v1490 = vsel %vm33, %v1465, 0
    %1492 = vmatprep.subr.mxu0 0.0
    %1493 = vmatpush1.msra.mxu0 %v1475
    %1494 = vmatprep.subr.mxu0 0.0
    %1495 = vmatpush1.msra.mxu0 %v1477
    %1496 = vmatprep.subr.mxu0 0.0
    %1497 = vmatpush1.msra.mxu0 %v1479
    %1498 = vmatprep.subr.mxu0 0.0
    %1499 = vmatpush1.msra.mxu0 %v1481
    %1500 = vmatprep.subr.mxu0 0.0
    %1501 = vmatpush1.msra.mxu0 0.0
    %1502 = vmatprep.subr.mxu0 0.0
    %1503 = vmatpush1.msra.mxu0 0.0
    %1504 = vmatprep.subr.mxu0 0.0
    %1505 = vmatpush1.msra.mxu0 0.0
    %1506 = vmatprep.subr.mxu0 0.0
    %1507 = vmatpush1.msra.mxu0 0.0
    %1508 = vmatprep.subr.mxu0 0.0
    %1509 = vmatpush1.msra.mxu0 0.0
    %1510 = vmatprep.subr.mxu0 0.0
    %1511 = vmatpush1.msra.mxu0 0.0
    %1512 = vmatprep.subr.mxu0 0.0
    %1513 = vmatpush1.msra.mxu0 0.0
    %1514 = vmatprep.subr.mxu0 0.0
    %1515 = vmatpush1.msra.mxu0 0.0
    %1516 = vmatprep.subr.mxu0 0.0
    %1517 = vmatpush1.msra.mxu0 0.0
    %1518 = vmatprep.subr.mxu0 0.0
    %1519 = vmatpush1.msra.mxu0 0.0
    %1520 = vmatprep.subr.mxu0 0.0
    %1521 = vmatpush1.msra.mxu0 0.0
    %1522 = vmatprep.subr.mxu0 0.0
    %1523 = vmatpush1.msra.mxu0 0.0
    %1524 = vmatprep.subr.mxu0 0.0
    %1525 = vmatpush1.msra.mxu0 0.0
    %1526 = vmatprep.subr.mxu0 0.0
    %1527 = vmatpush1.msra.mxu0 0.0
    %1528 = vmatprep.subr.mxu0 0.0
    %1529 = vmatpush1.msra.mxu0 0.0
    %1530 = vmatprep.subr.mxu0 0.0
    %1531 = vmatpush1.msra.mxu0 0.0
    %1532 = vmatprep.subr.mxu0 0.0
    %1533 = vmatpush1.msra.mxu0 0.0
    %1534 = vmatprep.subr.mxu0 0.0
    %1535 = vmatpush1.msra.mxu0 0.0
    %1536 = vmatprep.subr.mxu0 0.0
    %1537 = vmatpush1.msra.mxu0 0.0
    %1538 = vmatprep.subr.mxu0 0.0
    %1539 = vmatpush1.msra.mxu0 0.0
    %1540 = vmatprep.subr.mxu0 0.0
    %1541 = vmatpush1.msra.mxu0 0.0
    %1542 = vmatprep.subr.mxu0 0.0
    %1543 = vmatpush1.msra.mxu0 0.0
    %1544 = vmatprep.subr.mxu0 0.0
    %1545 = vmatpush1.msra.mxu0 0.0
    %1546 = vmatprep.subr.mxu0 0.0
    %1547 = vmatpush1.msra.mxu0 0.0
    %1548 = vmatprep.subr.mxu0 0.0
    %1549 = vmatpush1.msra.mxu0 0.0
    %1550 = vmatprep.subr.mxu0 0.0
    %1551 = vmatpush1.msra.mxu0 0.0
    %1552 = vmatprep.subr.mxu0 0.0
    %1553 = vmatpush1.msra.mxu0 0.0
    %1554 = vmatprep.subr.mxu0 0.0
    %1555 = vmatpush1.msra.mxu0 0.0
    %1556 = vmatprep.mubr.f32.mxu0 0.0
    %1557 = vmatmul.mubr.f32.gmra.mrb[0].mxu0 %v1487
    %v1558 = vpop.f32.mrb[0].mxu0
    %v1559 = vadd.f32 %v1469, %v1558
    %v1560 = vpop.f32.mrb[0].mxu0
    %1561 = vmatprep.mubr.f32.mxu0 0.0
    %1562 = vmatmul.mubr.f32.gmra.mrb[0].mxu0 %v1490
    %v1563 = vpop.f32.mrb[0].mxu0
    %v1564 = vadd.f32 %v1469, %v1563
    %v1565 = vpop.f32.mrb[0].mxu0
    %1566 = vdwg.mxu0
    %v1567 = vadd.f32 %v27, %v1559
    %v1568 = vadd.f32 %v28, %v1564
    %v1569 = vsel %vm33, %v1567, 0.0
    %1570 = vadd.xlane.f32.xlu0 %v1569
    %v1571 = vpop.xlane.xlu0 %1570
    %v1572 = vsel %vm33, %v1568, 0.0
    %1573 = vadd.xlane.f32.xlu0 %v1572
    %v1574 = vpop.xlane.xlu0 %1573
    %v1575 = vrcp.pop 32.0
    %v1576 = vmul.f32 %v1571, %v1575
    %v1577 = vmul.f32 %v1574, %v1575
    %v1578 = vsub.f32 %v1567, %v1576
    %v1579 = vsub.f32 %v1568, %v1577
    %v1580 = vmul.f32 %v1578, %v1578
    %v1581 = vmul.f32 %v1579, %v1579
    %v1582 = vsel %vm33, %v1580, 0.0
    %1583 = vadd.xlane.f32.xlu0 %v1582
    %v1584 = vpop.xlane.xlu0 %1583
    %v1585 = vsel %vm33, %v1581, 0.0
    %1586 = vadd.xlane.f32.xlu0 %v1585
    %v1587 = vpop.xlane.xlu0 %1586
    %v1588 = vmul.f32 %v1584, 0.032258064
    %v1589 = vmul.f32 %v1587, 0.032258064
    %v1590 = vrsqrt.pop %v1588
    %v1591 = vmul.f32 %v1588, %v1590
    %vm1592 = vcmp.eq.f32.partialorder %v1588, inf
    %v1593 = vsel %vm1592, %v1588, %v1591
    %vm1594 = vcmp.eq.f32.partialorder %v1588, 0.0
    %v1595 = vand.u32 %v1588, 2147483648
    %v1596 = vsel %vm1594, %v1595, %v1593
    %v1597 = vrsqrt.pop %v1589
    %v1598 = vmul.f32 %v1589, %v1597
    %vm1599 = vcmp.eq.f32.partialorder %v1589, inf
    %v1600 = vsel %vm1599, %v1589, %v1598
    %vm1601 = vcmp.eq.f32.partialorder %v1589, 0.0
    %v1602 = vand.u32 %v1589, 2147483648
    %v1603 = vsel %vm1601, %v1602, %v1600
    %v1604 = vadd.f32 %v1596, 1e-06
    %v1605 = vadd.f32 %v1603, 1e-06
    %v1606 = vrcp.pop %v1604
    %v1607 = vrcp.pop %v1605
    %v1608 = vmul.f32 %v1578, %v1606
    %v1609 = vmul.f32 %v1579, %v1607
    %v1610 = vlaneseq
    %v1611 = vshrl.u32 %v1610, 7
    %v1612 = vsub.s32 3, %v1611
    %v1613 = vrot.slane %v26, %v1612
    %v1614 = vmul.f32 %v1613, %v1608
    %v1615 = vmul.f32 %v1613, %v1609
    %1617 = vrot.lane.b32.xlu0 %v1613, 96
    %v1618 = vpop.permute.xlu0 %1617
    %v1620 = vadd.f32 %v1614, %v1618
    %v1621 = vadd.f32 %v1615, %v1618
    %v1622 = vlaneseq
    %v1623 = vshrl.u32 %v1622, 7
    %v1624 = vsub.s32 1, %v1623
    %v1625 = vrot.slane %v26, %v1624
    %v1627 = vsel %vm33, %v1620, 0
    %v1630 = vsel %vm33, %v1621, 0
    %1632 = vmatprep.subr.mxu0 0.0
    %1633 = vmatpush1.msra.mxu0 %v19
    %1634 = vmatprep.subr.mxu0 0.0
    %1635 = vmatpush1.msra.mxu0 %v21
    %1636 = vmatprep.subr.mxu0 0.0
    %1637 = vmatpush1.msra.mxu0 %v23
    %1638 = vmatprep.subr.mxu0 0.0
    %1639 = vmatpush1.msra.mxu0 %v25
    %1640 = vmatprep.subr.mxu0 0.0
    %1641 = vmatpush1.msra.mxu0 0.0
    %1642 = vmatprep.subr.mxu0 0.0
    %1643 = vmatpush1.msra.mxu0 0.0
    %1644 = vmatprep.subr.mxu0 0.0
    %1645 = vmatpush1.msra.mxu0 0.0
    %1646 = vmatprep.subr.mxu0 0.0
    %1647 = vmatpush1.msra.mxu0 0.0
    %1648 = vmatprep.subr.mxu0 0.0
    %1649 = vmatpush1.msra.mxu0 0.0
    %1650 = vmatprep.subr.mxu0 0.0
    %1651 = vmatpush1.msra.mxu0 0.0
    %1652 = vmatprep.subr.mxu0 0.0
    %1653 = vmatpush1.msra.mxu0 0.0
    %1654 = vmatprep.subr.mxu0 0.0
    %1655 = vmatpush1.msra.mxu0 0.0
    %1656 = vmatprep.subr.mxu0 0.0
    %1657 = vmatpush1.msra.mxu0 0.0
    %1658 = vmatprep.subr.mxu0 0.0
    %1659 = vmatpush1.msra.mxu0 0.0
    %1660 = vmatprep.subr.mxu0 0.0
    %1661 = vmatpush1.msra.mxu0 0.0
    %1662 = vmatprep.subr.mxu0 0.0
    %1663 = vmatpush1.msra.mxu0 0.0
    %1664 = vmatprep.subr.mxu0 0.0
    %1665 = vmatpush1.msra.mxu0 0.0
    %1666 = vmatprep.subr.mxu0 0.0
    %1667 = vmatpush1.msra.mxu0 0.0
    %1668 = vmatprep.subr.mxu0 0.0
    %1669 = vmatpush1.msra.mxu0 0.0
    %1670 = vmatprep.subr.mxu0 0.0
    %1671 = vmatpush1.msra.mxu0 0.0
    %1672 = vmatprep.subr.mxu0 0.0
    %1673 = vmatpush1.msra.mxu0 0.0
    %1674 = vmatprep.subr.mxu0 0.0
    %1675 = vmatpush1.msra.mxu0 0.0
    %1676 = vmatprep.subr.mxu0 0.0
    %1677 = vmatpush1.msra.mxu0 0.0
    %1678 = vmatprep.subr.mxu0 0.0
    %1679 = vmatpush1.msra.mxu0 0.0
    %1680 = vmatprep.subr.mxu0 0.0
    %1681 = vmatpush1.msra.mxu0 0.0
    %1682 = vmatprep.subr.mxu0 0.0
    %1683 = vmatpush1.msra.mxu0 0.0
    %1684 = vmatprep.subr.mxu0 0.0
    %1685 = vmatpush1.msra.mxu0 0.0
    %1686 = vmatprep.subr.mxu0 0.0
    %1687 = vmatpush1.msra.mxu0 0.0
    %1688 = vmatprep.subr.mxu0 0.0
    %1689 = vmatpush1.msra.mxu0 0.0
    %1690 = vmatprep.subr.mxu0 0.0
    %1691 = vmatpush1.msra.mxu0 0.0
    %1692 = vmatprep.subr.mxu0 0.0
    %1693 = vmatpush1.msra.mxu0 0.0
    %1694 = vmatprep.subr.mxu0 0.0
    %1695 = vmatpush1.msra.mxu0 0.0
    %1696 = vmatprep.mubr.f32.mxu0 0.0
    %1697 = vmatmul.mubr.f32.gmra.mrb[0].mxu0 %v1627
    %v1698 = vpop.f32.mrb[0].mxu0
    %v1699 = vadd.f32 %v1625, %v1698
    %v1700 = vpop.f32.mrb[0].mxu0
    %1701 = vmatprep.mubr.f32.mxu0 0.0
    %1702 = vmatmul.mubr.f32.gmra.mrb[0].mxu0 %v1630
    %v1703 = vpop.f32.mrb[0].mxu0
    %v1704 = vadd.f32 %v1625, %v1703
    %v1705 = vpop.f32.mrb[0].mxu0
    %1706 = vdwg.mxu0
    %v1707 = vmax.f32 %v1699, 0.0
    %v1708 = vmax.f32 %v1704, 0.0
    %v1709 = vld [vmem:[%s2] sm:$0xff]
    %v1710 = vld [vmem:[%s2 + $0x8] sm:$0xff]
    %v1711 = vld [vmem:[%s2 + $0x10] sm:$0xff]
    %v1712 = vld [vmem:[%s2 + $0x18] sm:$0xff]
    %v1713 = vld [vmem:[%s2 + $0x20] sm:$0xff]
    %v1714 = vld [vmem:[%s2 + $0x28] sm:$0xff]
    %v1715 = vld [vmem:[%s2 + $0x30] sm:$0xff]
    %v1716 = vld [vmem:[%s2 + $0x38] sm:$0xff]
    %1718 = vrot.lane.b32.xlu0 %v1469, 96
    %v1719 = vpop.permute.xlu0 %1718
    %vm1721 = vcmask 523264
    %v1723 = vsel %vm1721, %v1707, 0
    %v1726 = vsel %vm1721, %v1708, 0
    %1728 = vmatprep.subr.mxu0 0.0
    %1729 = vmatpush1.msra.mxu0 %v1709
    %1730 = vmatprep.subr.mxu0 0.0
    %1731 = vmatpush1.msra.mxu0 %v1710
    %1732 = vmatprep.subr.mxu0 0.0
    %1733 = vmatpush1.msra.mxu0 %v1711
    %1734 = vmatprep.subr.mxu0 0.0
    %1735 = vmatpush1.msra.mxu0 %v1712
    %1736 = vmatprep.subr.mxu0 0.0
    %1737 = vmatpush1.msra.mxu0 %v1713
    %1738 = vmatprep.subr.mxu0 0.0
    %1739 = vmatpush1.msra.mxu0 %v1714
    %1740 = vmatprep.subr.mxu0 0.0
    %1741 = vmatpush1.msra.mxu0 %v1715
    %1742 = vmatprep.subr.mxu0 0.0
    %1743 = vmatpush1.msra.mxu0 %v1716
    %1744 = vmatprep.subr.mxu0 0.0
    %1745 = vmatpush1.msra.mxu0 0.0
    %1746 = vmatprep.subr.mxu0 0.0
    %1747 = vmatpush1.msra.mxu0 0.0
    %1748 = vmatprep.subr.mxu0 0.0
    %1749 = vmatpush1.msra.mxu0 0.0
    %1750 = vmatprep.subr.mxu0 0.0
    %1751 = vmatpush1.msra.mxu0 0.0
    %1752 = vmatprep.subr.mxu0 0.0
    %1753 = vmatpush1.msra.mxu0 0.0
    %1754 = vmatprep.subr.mxu0 0.0
    %1755 = vmatpush1.msra.mxu0 0.0
    %1756 = vmatprep.subr.mxu0 0.0
    %1757 = vmatpush1.msra.mxu0 0.0
    %1758 = vmatprep.subr.mxu0 0.0
    %1759 = vmatpush1.msra.mxu0 0.0
    %1760 = vmatprep.subr.mxu0 0.0
    %1761 = vmatpush1.msra.mxu0 0.0
    %1762 = vmatprep.subr.mxu0 0.0
    %1763 = vmatpush1.msra.mxu0 0.0
    %1764 = vmatprep.subr.mxu0 0.0
    %1765 = vmatpush1.msra.mxu0 0.0
    %1766 = vmatprep.subr.mxu0 0.0
    %1767 = vmatpush1.msra.mxu0 0.0
    %1768 = vmatprep.subr.mxu0 0.0
    %1769 = vmatpush1.msra.mxu0 0.0
    %1770 = vmatprep.subr.mxu0 0.0
    %1771 = vmatpush1.msra.mxu0 0.0
    %1772 = vmatprep.subr.mxu0 0.0
    %1773 = vmatpush1.msra.mxu0 0.0
    %1774 = vmatprep.subr.mxu0 0.0
    %1775 = vmatpush1.msra.mxu0 0.0
    %1776 = vmatprep.subr.mxu0 0.0
    %1777 = vmatpush1.msra.mxu0 0.0
    %1778 = vmatprep.subr.mxu0 0.0
    %1779 = vmatpush1.msra.mxu0 0.0
    %1780 = vmatprep.subr.mxu0 0.0
    %1781 = vmatpush1.msra.mxu0 0.0
    %1782 = vmatprep.subr.mxu0 0.0
    %1783 = vmatpush1.msra.mxu0 0.0
    %1784 = vmatprep.subr.mxu0 0.0
    %1785 = vmatpush1.msra.mxu0 0.0
    %1786 = vmatprep.subr.mxu0 0.0
    %1787 = vmatpush1.msra.mxu0 0.0
    %1788 = vmatprep.subr.mxu0 0.0
    %1789 = vmatpush1.msra.mxu0 0.0
    %1790 = vmatprep.subr.mxu0 0.0
    %1791 = vmatpush1.msra.mxu0 0.0
    %1792 = vmatprep.mubr.f32.mxu0 0.0
    %1793 = vmatmul.mubr.f32.gmra.mrb[0].mxu0 %v1723
    %v1794 = vpop.f32.mrb[0].mxu0
    %v1795 = vadd.f32 %v1719, %v1794
    %v1796 = vpop.f32.mrb[0].mxu0
    %1797 = vmatprep.mubr.f32.mxu0 0.0
    %1798 = vmatmul.mubr.f32.gmra.mrb[0].mxu0 %v1726
    %v1799 = vpop.f32.mrb[0].mxu0
    %v1800 = vadd.f32 %v1719, %v1799
    %v1801 = vpop.f32.mrb[0].mxu0
    %1802 = vdwg.mxu0
    %v1803 = vadd.f32 %v1620, %v1795
    %v1804 = vadd.f32 %v1621, %v1800
    %v1805 = vsel %vm33, %v1803, 0.0
    %1806 = vadd.xlane.f32.xlu0 %v1805
    %v1807 = vpop.xlane.xlu0 %1806
    %v1808 = vsel %vm33, %v1804, 0.0
    %1809 = vadd.xlane.f32.xlu0 %v1808
    %v1810 = vpop.xlane.xlu0 %1809
    %v1811 = vmul.f32 %v1807, %v1575
    %v1812 = vmul.f32 %v1810, %v1575
    %v1813 = vsub.f32 %v1803, %v1811
    %v1814 = vsub.f32 %v1804, %v1812
    %v1815 = vmul.f32 %v1813, %v1813
    %v1816 = vmul.f32 %v1814, %v1814
    %v1817 = vsel %vm33, %v1815, 0.0
    %1818 = vadd.xlane.f32.xlu0 %v1817
    %v1819 = vpop.xlane.xlu0 %1818
    %v1820 = vsel %vm33, %v1816, 0.0
    %1821 = vadd.xlane.f32.xlu0 %v1820
    %v1822 = vpop.xlane.xlu0 %1821
    %v1823 = vmul.f32 %v1819, 0.032258064
    %v1824 = vmul.f32 %v1822, 0.032258064
    %v1825 = vrsqrt.pop %v1823
    %v1826 = vmul.f32 %v1823, %v1825
    %vm1827 = vcmp.eq.f32.partialorder %v1823, inf
    %v1828 = vsel %vm1827, %v1823, %v1826
    %vm1829 = vcmp.eq.f32.partialorder %v1823, 0.0
    %v1830 = vand.u32 %v1823, 2147483648
    %v1831 = vsel %vm1829, %v1830, %v1828
    %v1832 = vrsqrt.pop %v1824
    %v1833 = vmul.f32 %v1824, %v1832
    %vm1834 = vcmp.eq.f32.partialorder %v1824, inf
    %v1835 = vsel %vm1834, %v1824, %v1833
    %vm1836 = vcmp.eq.f32.partialorder %v1824, 0.0
    %v1837 = vand.u32 %v1824, 2147483648
    %v1838 = vsel %vm1836, %v1837, %v1835
    %v1839 = vadd.f32 %v1831, 1e-06
    %v1840 = vadd.f32 %v1838, 1e-06
    %v1841 = vrcp.pop %v1839
    %v1842 = vrcp.pop %v1840
    %v1843 = vmul.f32 %v1813, %v1841
    %v1844 = vmul.f32 %v1814, %v1842
    %1847 = vrot.lane.b32.xlu0 %v1843, 64
    %v1848 = vpop.permute.xlu0 %1847
    %1849 = vrot.lane.b32.xlu0 %v1844, 64
    %v1850 = vpop.permute.xlu0 %1849
    %v1853 = vmul.f32 %v1613, %v1848
    %v1854 = vmul.f32 %v1613, %v1850
    %v1855 = vadd.f32 %v1853, %v1618
    %v1856 = vadd.f32 %v1854, %v1618
    %1859 = vrot.lane.b32.xlu0 %v1855, 64
    %v1860 = vpop.permute.xlu0 %1859
    %1861 = vrot.lane.b32.xlu0 %v1856, 64
    %v1862 = vpop.permute.xlu0 %1861
    %1865 = vst.msk [vmem:[#allocation2] sm:$0xff] %vm33, %v1860
    %1866 = vst.msk [vmem:[#allocation2 + $0x8] sm:$0xff] %vm33, %v1862
    // Predicated region
    $region18: #{tpu_custom_call.1} parent=1 // pred_check
      _
    $region19: #{tpu_custom_call.1} parent=1 // pred_check_branch
      %1868 = sbr.rel (0) target = $region21
    $region20: #{tpu_custom_call.1} parent=1 // pred_region
      %s1870 = ssub.s32 256, 256
      %1871 = vsyncadd [#allocation3], %s1870
      %s1872 = sshll.u32 [#allocation2], 4
      %s1873 = int_to_ptr.vmem [resolvable:$true] %s1872
      %1878 = dma.vmem_to_hbm [thread:$0]  %s1873, 256, %s4, [#allocation3], 128, 128, 8
    $region21: #{tpu_custom_call.1} parent=1 // pred_fallthru
      _
    // Predicated region
    $region22: #{tpu_custom_call.1} parent=1 // pred_check
      _
    $region23: #{tpu_custom_call.1} parent=1 // pred_check_branch
      %1880 = sbr.rel (0) target = $region25
    $region24: #{tpu_custom_call.1} parent=1 // pred_region
      %1881 = dma.done [#allocation3], 256
    $region25: #{tpu_custom_call.1} parent=1 // pred_fallthru
      _
    %1882 = vsyncpa [#allocation3], 1

</llo_original>
